<compile_context>
chip_gen: v6e
topology: v6e:2x2x1
jax: 0.10.0
libtpu: 0.0.40
codegen_flags: <defaults>
</compile_context>

<pallas_src>
import functools

import jax
import jax.numpy as jnp
from jax import lax
from jax.experimental import pallas as pl
from jax.experimental.pallas import tpu as pltpu


def _round_up(x, m):
    return (x + m - 1) // m * m


def _backbone_kernel(x_ref, wc_ref, bc_ref, pool_ref, wp_ref, bp_ref, out_ref,
                     *, taps, L, S):
    # x_ref block: [1, NE, C] f32 -- flattened, spatially padded NHWC image for
    # one batch element with a zero margin of S rows on each side, so every
    # 3x3 tap is a plain static slice (no HBM im2col, no masking).
    xe = x_ref[0]                                                  # [NE, C]
    cols = [xe[S + s:S + s + L, :] for s in taps]                  # 9 x [L, C]
    patches = jnp.concatenate(cols, axis=-1).astype(jnp.bfloat16)  # [L, 9*C]

    # Conv as one MXU matmul (bf16 operands, f32 accumulate) + bias + ReLU (f32).
    y = jnp.dot(patches, wc_ref[...], preferred_element_type=jnp.float32)
    y = jnp.maximum(y + bc_ref[...], 0.0)                          # [L, HP]

    # Mean-pool over height as an MXU matmul with an averaging matrix (1/H folded in).
    pooled = jnp.dot(pool_ref[...], y.astype(jnp.bfloat16),
                     preferred_element_type=jnp.float32)           # [W, HP]

    # Projection to the (lane-dense, 128-padded) feature dimension.
    out = jnp.dot(pooled.astype(jnp.bfloat16), wp_ref[...],
                  preferred_element_type=jnp.float32) + bp_ref[...]
    out_ref[0] = out.astype(out_ref.dtype)                         # [W, FP]


def cnn_backbone_forward(x_nchw, params):
    """x_nchw: [B, C, H, W] (PyTorch layout). Returns [B, seq_len=W, feature_size] f32."""
    B, C, H, W = x_nchw.shape
    conv_w, conv_b = params["conv_w"], params["conv_b"]
    proj_w, proj_b = params["proj_w"], params["proj_b"]
    K9 = conv_w.shape[0]                     # 9 * C, row order (kh, kw, c)
    hidden = conv_w.shape[-1]
    F = proj_w.shape[-1]

    HP = _round_up(max(hidden, 128), 128)    # lane-dense hidden
    FP = _round_up(max(F, 128), 128)         # lane-dense output features
    Wp = W + 2                               # padded width
    S = Wp + 1                               # max |tap shift| (margin size)
    L = _round_up((H + 2) * Wp, 8)           # conv rows computed (incl. halo rows)
    NE = _round_up(L + 2 * S, 8)             # extended flat length
    # Flat shift of tap (kh, kw) in the padded row-major layout.
    taps = tuple((kh - 1) * Wp + (kw - 1) for kh in range(3) for kw in range(3))

    # ---- host-side glue: layout only, ~1.3x input bytes (not 9x im2col) ----
    x_nhwc = jnp.transpose(x_nchw, (0, 2, 3, 1))                   # [B, H, W, C]
    xp = jnp.pad(x_nhwc, ((0, 0), (1, 1), (1, 1), (0, 0)))         # [B, H+2, W+2, C]
    xf = xp.reshape(B, (H + 2) * Wp, C)
    x_ext = jnp.pad(xf, ((0, 0), (S, NE - S - (H + 2) * Wp), (0, 0)))
    x_ext = x_ext.astype(jnp.float32)                              # [B, NE, C]

    # Lane-dense (128-padded) weights; bf16 matmul operands, f32 biases.
    wc = jnp.pad(conv_w, ((0, 0), (0, HP - hidden))).astype(jnp.bfloat16)   # [9C, HP]
    bc = jnp.pad(conv_b, (0, HP - hidden)).reshape(1, HP).astype(jnp.float32)
    wp = jnp.pad(proj_w, ((0, HP - hidden), (0, FP - F))).astype(jnp.bfloat16)
    bp = jnp.pad(proj_b, (0, FP - F)).reshape(1, FP).astype(jnp.float32)

    # Averaging matrix: pooled[w] = mean_h y[(h+1)*Wp + (w+1)]  (1/H folded in).
    q_idx = (jnp.arange(H)[:, None] + 1) * Wp + (jnp.arange(W)[None, :] + 1)  # [H, W]
    pool = (jax.nn.one_hot(q_idx, L, dtype=jnp.float32).sum(axis=0) / H)
    pool = pool.astype(jnp.bfloat16)                               # [W, L]

    kernel = functools.partial(_backbone_kernel, taps=taps, L=L, S=S)

    flops = B * (2 * L * K9 * HP + 2 * W * L * HP + 2 * W * HP * FP)
    bytes_accessed = (x_ext.size * 4 + wc.size * 2 + bc.size * 4 + pool.size * 2
                      + wp.size * 2 + bp.size * 4 + B * W * FP * 4)

    out = pl.pallas_call(
        kernel,
        out_shape=jax.ShapeDtypeStruct((B, W, FP), jnp.float32),
        grid=(B,),
        in_specs=[
            pl.BlockSpec((1, NE, C), lambda b: (b, 0, 0)),
            pl.BlockSpec((K9, HP), lambda b: (0, 0)),
            pl.BlockSpec((1, HP), lambda b: (0, 0)),
            pl.BlockSpec((W, L), lambda b: (0, 0)),
            pl.BlockSpec((HP, FP), lambda b: (0, 0)),
            pl.BlockSpec((1, FP), lambda b: (0, 0)),
        ],
        out_specs=pl.BlockSpec((1, W, FP), lambda b: (b, 0, 0)),
        compiler_params=pltpu.CompilerParams(
            dimension_semantics=("parallel",)),
        cost_estimate=pl.CostEstimate(
            flops=flops, transcendentals=0, bytes_accessed=bytes_accessed),
    )(x_ext, wc, bc, pool, wp, bp)

    return out[:, :, :F]                                           # [B, W, F]


def init_params(key, C, hidden, feature_size):
    k1, k2, k3, k4 = jax.random.split(key, 4)
    # Conv weight in matmul form: [9*C, hidden], row order (kh, kw, c) --
    # matches the in-kernel tap-concatenation order.
    conv_w = jax.random.normal(k1, (9 * C, hidden), jnp.float32) * 0.05
    conv_b = jax.random.normal(k2, (hidden,), jnp.float32) * 0.01
    proj_w = jax.random.normal(k3, (hidden, feature_size), jnp.float32) * 0.05
    proj_b = jax.random.normal(k4, (feature_size,), jnp.float32) * 0.01
    return {"conv_w": conv_w, "conv_b": conv_b,
            "proj_w": proj_w, "proj_b": proj_b}


def reference_forward(x_nchw, params):
    """Pure-JAX f32 reference using lax.conv (PyTorch NCHW semantics)."""
    B, C, H, W = x_nchw.shape
    hidden = params["conv_w"].shape[-1]
    # Rebuild OIHW conv weight from the matmul-form weight (row order (kh, kw, c)).
    w_oihw = jnp.transpose(
        params["conv_w"].reshape(3, 3, C, hidden), (3, 2, 0, 1))
    y = lax.conv_general_dilated(
        x_nchw, w_oihw, window_strides=(1, 1), padding="SAME",
        dimension_numbers=("NCHW", "OIHW", "NCHW"))
    y = y + params["conv_b"].reshape(1, hidden, 1, 1)
    y = jnp.maximum(y, 0.0)                                # [B, hid, H, W]
    pooled = jnp.mean(y, axis=2)                           # [B, hid, W]
    seq = jnp.transpose(pooled, (0, 2, 1))                 # [B, W, hid]
    return seq @ params["proj_w"] + params["proj_b"]       # [B, W, F]


if __name__ == "__main__":
    B, C, H, W = 2, 4, 16, 16
    hidden, feature_size = 32, 32

    key = jax.random.PRNGKey(0)
    kx, kp = jax.random.split(key)
    x = jax.random.normal(kx, (B, C, H, W), jnp.float32)
    params = init_params(kp, C, hidden, feature_size)

    out = jax.block_until_ready(cnn_backbone_forward(x, params))
    ref = jax.block_until_ready(reference_forward(x, params))

    assert out.shape == (B, W, feature_size), out.shape
    err = float(jnp.max(jnp.abs(out - ref)))
    # bf16 matmul operands with f32 accumulation -> loosened tolerance.
    assert err < 2e-2, err
    print("KERNEL_OK")
</pallas_src>

<mosaic_0001>
module attributes {stable_mosaic.version = 11 : i64} {
  func.func @_backbone_kernel(%arg0: i32, %arg1: memref<1x368x4xf32, #tpu.memory_space<vmem>>, %arg2: memref<36x128xbf16, #tpu.memory_space<vmem>>, %arg3: memref<1x128xf32, #tpu.memory_space<vmem>>, %arg4: memref<16x328xbf16, #tpu.memory_space<vmem>>, %arg5: memref<128x128xbf16, #tpu.memory_space<vmem>>, %arg6: memref<1x128xf32, #tpu.memory_space<vmem>>, %arg7: memref<1x16x128xf32, #tpu.memory_space<vmem>>) attributes {dimension_semantics = [#tpu.dimension_semantics<parallel>], iteration_bounds = array<i64: 2>, scalar_prefetch = 0 : i64, scratch_operands = 0 : i64, tpu.core_type = #tpu.core_type<tc>, window_params = [{transform_indices = @transform_0, window_bounds = array<i64: 1, 368, 4>}, {pipeline_mode = #tpu.pipeline_mode<synchronous>, transform_indices = @transform_1, window_bounds = array<i64: 36, 128>}, {pipeline_mode = #tpu.pipeline_mode<synchronous>, transform_indices = @transform_2, window_bounds = array<i64: 1, 128>}, {pipeline_mode = #tpu.pipeline_mode<synchronous>, transform_indices = @transform_3, window_bounds = array<i64: 16, 328>}, {pipeline_mode = #tpu.pipeline_mode<synchronous>, transform_indices = @transform_4, window_bounds = array<i64: 128, 128>}, {pipeline_mode = #tpu.pipeline_mode<synchronous>, transform_indices = @transform_5, window_bounds = array<i64: 1, 128>}, {transform_indices = @transform_6, window_bounds = array<i64: 1, 16, 128>}]} {
    %c0 = arith.constant 0 : index
    %c0_0 = arith.constant 0 : index
    %c0_1 = arith.constant 0 : index
    %0 = vector.load %arg1[%c0, %c0_0, %c0_1] : memref<1x368x4xf32, #tpu.memory_space<vmem>>, vector<1x368x4xf32>
    %1 = vector.shape_cast %0 : vector<1x368x4xf32> to vector<368x4xf32>
    %2 = vector.extract_strided_slice %1 {offsets = [0, 0], sizes = [328, 4], strides = [1, 1]} : vector<368x4xf32> to vector<328x4xf32>
    %3 = vector.extract_strided_slice %1 {offsets = [1, 0], sizes = [328, 4], strides = [1, 1]} : vector<368x4xf32> to vector<328x4xf32>
    %4 = vector.extract_strided_slice %1 {offsets = [2, 0], sizes = [328, 4], strides = [1, 1]} : vector<368x4xf32> to vector<328x4xf32>
    %5 = vector.extract_strided_slice %1 {offsets = [18, 0], sizes = [328, 4], strides = [1, 1]} : vector<368x4xf32> to vector<328x4xf32>
    %6 = vector.extract_strided_slice %1 {offsets = [19, 0], sizes = [328, 4], strides = [1, 1]} : vector<368x4xf32> to vector<328x4xf32>
    %7 = vector.extract_strided_slice %1 {offsets = [20, 0], sizes = [328, 4], strides = [1, 1]} : vector<368x4xf32> to vector<328x4xf32>
    %8 = vector.extract_strided_slice %1 {offsets = [36, 0], sizes = [328, 4], strides = [1, 1]} : vector<368x4xf32> to vector<328x4xf32>
    %9 = vector.extract_strided_slice %1 {offsets = [37, 0], sizes = [328, 4], strides = [1, 1]} : vector<368x4xf32> to vector<328x4xf32>
    %10 = vector.extract_strided_slice %1 {offsets = [38, 0], sizes = [328, 4], strides = [1, 1]} : vector<368x4xf32> to vector<328x4xf32>
    %11 = tpu.concatenate %2, %3, %4, %5, %6, %7, %8, %9, %10 in 1 : vector<328x4xf32>, vector<328x4xf32>, vector<328x4xf32>, vector<328x4xf32>, vector<328x4xf32>, vector<328x4xf32>, vector<328x4xf32>, vector<328x4xf32>, vector<328x4xf32> -> vector<328x36xf32>
    %12 = arith.truncf %11 : vector<328x36xf32> to vector<328x36xbf16>
    %c0_2 = arith.constant 0 : index
    %c0_3 = arith.constant 0 : index
    %13 = vector.load %arg2[%c0_2, %c0_3] : memref<36x128xbf16, #tpu.memory_space<vmem>>, vector<36x128xbf16>
    %cst = arith.constant dense<0.000000e+00> : vector<328x128xf32>
    %14 = tpu.matmul %12, %13, %cst {dimension_numbers = #tpu.dot_dimension_numbers<[1], [0], [0], [1], [0, 0, 1, 1], [], []>} : vector<328x36xbf16>, vector<36x128xbf16>, vector<328x128xf32> -> vector<328x128xf32>
    %c0_4 = arith.constant 0 : index
    %c0_5 = arith.constant 0 : index
    %15 = vector.load %arg3[%c0_4, %c0_5] : memref<1x128xf32, #tpu.memory_space<vmem>>, vector<1x128xf32>
    %16 = vector.broadcast %15 : vector<1x128xf32> to vector<328x128xf32>
    %17 = arith.addf %14, %16 : vector<328x128xf32>
    %cst_6 = arith.constant 0.000000e+00 : f32
    %18 = vector.broadcast %cst_6 : f32 to vector<328x128xf32>
    %19 = arith.maximumf %17, %18 : vector<328x128xf32>
    %c0_7 = arith.constant 0 : index
    %c0_8 = arith.constant 0 : index
    %20 = vector.load %arg4[%c0_7, %c0_8] : memref<16x328xbf16, #tpu.memory_space<vmem>>, vector<16x328xbf16>
    %21 = arith.truncf %19 : vector<328x128xf32> to vector<328x128xbf16>
    %cst_9 = arith.constant dense<0.000000e+00> : vector<16x128xf32>
    %22 = tpu.matmul %20, %21, %cst_9 {dimension_numbers = #tpu.dot_dimension_numbers<[1], [0], [0], [1], [0, 0, 1, 1], [], []>} : vector<16x328xbf16>, vector<328x128xbf16>, vector<16x128xf32> -> vector<16x128xf32>
    %23 = arith.truncf %22 : vector<16x128xf32> to vector<16x128xbf16>
    %c0_10 = arith.constant 0 : index
    %c0_11 = arith.constant 0 : index
    %24 = vector.load %arg5[%c0_10, %c0_11] : memref<128x128xbf16, #tpu.memory_space<vmem>>, vector<128x128xbf16>
    %cst_12 = arith.constant dense<0.000000e+00> : vector<16x128xf32>
    %25 = tpu.matmul %23, %24, %cst_12 {dimension_numbers = #tpu.dot_dimension_numbers<[1], [0], [0], [1], [0, 0, 1, 1], [], []>} : vector<16x128xbf16>, vector<128x128xbf16>, vector<16x128xf32> -> vector<16x128xf32>
    %c0_13 = arith.constant 0 : index
    %c0_14 = arith.constant 0 : index
    %26 = vector.load %arg6[%c0_13, %c0_14] : memref<1x128xf32, #tpu.memory_space<vmem>>, vector<1x128xf32>
    %27 = vector.broadcast %26 : vector<1x128xf32> to vector<16x128xf32>
    %28 = arith.addf %25, %27 : vector<16x128xf32>
    %c0_15 = arith.constant 0 : index
    %c0_16 = arith.constant 0 : index
    %c0_17 = arith.constant 0 : index
    %29 = vector.load %arg7[%c0_15, %c0_16, %c0_17] : memref<1x16x128xf32, #tpu.memory_space<vmem>>, vector<1x16x128xf32>
    %30 = vector.shape_cast %29 : vector<1x16x128xf32> to vector<16x128xf32>
    %31 = vector.shape_cast %28 : vector<16x128xf32> to vector<1x16x128xf32>
    tpu.vector_store %arg7[%c0_15, %c0_16, %c0_17], %31 {strides = array<i32>} : memref<1x16x128xf32, #tpu.memory_space<vmem>>, vector<1x16x128xf32>,
    return
  }
  func.func @transform_0(%arg0: i32) -> (i32, i32, i32) {
    %c0_i32 = arith.constant 0 : i32
    %c0_i32_0 = arith.constant 0 : i32
    %c0_i32_1 = arith.constant 0 : i32
    return %arg0, %c0_i32, %c0_i32_0 : i32, i32, i32
  }
  func.func @transform_1(%arg0: i32) -> (i32, i32) {
    %c0_i32 = arith.constant 0 : i32
    %c0_i32_0 = arith.constant 0 : i32
    %c0_i32_1 = arith.constant 0 : i32
    return %c0_i32, %c0_i32_0 : i32, i32
  }
  func.func @transform_2(%arg0: i32) -> (i32, i32) {
    %c0_i32 = arith.constant 0 : i32
    %c0_i32_0 = arith.constant 0 : i32
    %c0_i32_1 = arith.constant 0 : i32
    return %c0_i32, %c0_i32_0 : i32, i32
  }
  func.func @transform_3(%arg0: i32) -> (i32, i32) {
    %c0_i32 = arith.constant 0 : i32
    %c0_i32_0 = arith.constant 0 : i32
    %c0_i32_1 = arith.constant 0 : i32
    return %c0_i32, %c0_i32_0 : i32, i32
  }
  func.func @transform_4(%arg0: i32) -> (i32, i32) {
    %c0_i32 = arith.constant 0 : i32
    %c0_i32_0 = arith.constant 0 : i32
    %c0_i32_1 = arith.constant 0 : i32
    return %c0_i32, %c0_i32_0 : i32, i32
  }
  func.func @transform_5(%arg0: i32) -> (i32, i32) {
    %c0_i32 = arith.constant 0 : i32
    %c0_i32_0 = arith.constant 0 : i32
    %c0_i32_1 = arith.constant 0 : i32
    return %c0_i32, %c0_i32_0 : i32, i32
  }
  func.func @transform_6(%arg0: i32) -> (i32, i32, i32) {
    %c0_i32 = arith.constant 0 : i32
    %c0_i32_0 = arith.constant 0 : i32
    %c0_i32_1 = arith.constant 0 : i32
    return %arg0, %c0_i32, %c0_i32_0 : i32, i32, i32
  }
}

</mosaic_0001>

<llo_original>
// kernel: tpu_custom_call.1
$region0: #{tpu_custom_call.1}
  #allocation0 [shape = 'u32[]', space=smem, size = 0x4, offset = 0x4, fixed_abs, tag = 'smem constant byte address 0x4 - core index']
  #allocation1 [shape = 'u32[144,128]{1,0:T(1,128)}', space=vmem, size = 0x12000, scoped, tag = 'internal scratch']
  %s0 = inlined_call_operand.vmem [shape: f32[2,368,4], index: 0, kind: input, shape index: {}]
  %s1 = inlined_call_operand.vmem [shape: bf16[36,128], index: 1, kind: input, shape index: {}]
  %s2 = inlined_call_operand.vmem [shape: f32[1,128], index: 2, kind: input, shape index: {}]
  %s3 = inlined_call_operand.vmem [shape: bf16[16,328], index: 3, kind: input, shape index: {}]
  %s4 = inlined_call_operand.vmem [shape: bf16[128,128], index: 4, kind: input, shape index: {}]
  %s5 = inlined_call_operand.vmem [shape: f32[1,128], index: 5, kind: input, shape index: {}]
  %s6 = inlined_call_operand.hbm [shape: f32[2,16,128], index: 6, kind: output, shape index: {}]
  %s7 = sld [smem:[#allocation0]]
  $region57: #{tpu_custom_call.1} parent=0
    _
  %s9 = ssub.s32 1, %s7
  %s10 = scalar_select 0, %s9, %s7
  $region1: #{tpu_custom_call.1} parent=0
    #allocation2 [shape = 'u8[16384]{0}', space=vmem, size = 0x4000, scoped, tag = 'output window, operand 0']
    #allocation3 [shape = 's32[2]{0}', space=sflag, size = 0x8, scoped, tag = 'scoped memory for tpu_custom_call.1']
    %11 = vsyncpa [#allocation3], 0
    %s12 = scalar_lea.sflag [#allocation3], 1
    %13 = vsyncpa %s12, 0
    loop: start=0, step=1, limit=4
    $region2: #{tpu_custom_call.1} parent=1 // loop_pre_header
      _
    $region3: #{tpu_custom_call.1} parent=1 // loop_header
      %s15 = sphi 0, %s19
      %p16 = scmp.ge.s32.totalorder %s15, 4
      %s25 = sphi 0, %s27
      %s28 = sphi 0, %s25
      %s29 = sphi 0, %s28
      %s45 = sphi 0, %s29
      %s49 = sphi 0, %s49
      %s51 = sphi 0, %s49
      %s52 = sphi 0, %s51
      %s66 = sphi 0, %s52
      %s70 = sphi 0, %s70
      %s72 = sphi 0, %s70
      %s73 = sphi 0, %s72
      %s87 = sphi 0, %s73
      %s91 = sphi 0, %s91
      %s93 = sphi 0, %s91
      %s94 = sphi 0, %s93
      %s108 = sphi 0, %s94
      %s112 = sphi 0, %s112
      %s114 = sphi 0, %s112
      %s115 = sphi 0, %s114
      %s129 = sphi 0, %s115
      %s133 = sphi 0, %s133
      %s135 = sphi 0, %s133
      %s136 = sphi 0, %s135
      %s150 = sphi 0, %s136
      %s156 = sphi 0, %s158
      %s159 = sphi 0, %s156
      %s160 = sphi 0, %s159
      %s176 = sphi 0, %s160
    $region4: #{tpu_custom_call.1} parent=1 // loop_header_branch
      %18 = sbr.rel (%p16) target = $region8
    $region5: #{tpu_custom_call.1} parent=1 // loop_body
      %s20 = ssub.s32 %s15, 1
      %s21 = ssub.s32 %s15, 2
      %s22 = sadd.s32 %s15, 1
      %s23 = ssub.s32 %s15, %s22
      %p24 = scmp.eq.s32.totalorder %s23, 0
      %s26 = sadd.s32 %s25, 1
      %s27 = scalar_select %p24, %s25, %s26
      %p30 = pneg %p24
      %p31 = scmp.eq.s32.totalorder %s15, 1
      %p32 = por %p30, %p31
      %p33 = scmp.ne.s32.totalorder %s25, %s28
      %p34 = scmp.eq.s32.totalorder %s15, 0
      %p35 = por %p33, %p34
      %p36 = scmp.ne.s32.totalorder %s25, %s28
      %p37 = scmp.eq.s32.totalorder %s20, 1
      %p38 = por %p36, %p37
      %p39 = scmp.ne.s32.totalorder %s28, %s29
      %p40 = scmp.eq.s32.totalorder %s20, 0
      %p41 = por %p39, %p40
      %p42 = scmp.ne.s32.totalorder %s28, %s29
      %p43 = scmp.eq.s32.totalorder %s21, 1
      %p44 = por %p42, %p43
      %p46 = scmp.ne.s32.totalorder %s29, %s45
      %p47 = scmp.eq.s32.totalorder %s21, 0
      %p48 = por %p46, %p47
      %s50 = sadd.s32 %s49, 1
      %p53 = scmp.eq.s32.totalorder %s15, 1
      %p54 = scmp.ne.s32.totalorder %s49, %s51
      %p55 = scmp.eq.s32.totalorder %s15, 0
      %p56 = por %p54, %p55
      %p57 = scmp.ne.s32.totalorder %s49, %s51
      %p58 = scmp.eq.s32.totalorder %s20, 1
      %p59 = por %p57, %p58
      %p60 = scmp.ne.s32.totalorder %s51, %s52
      %p61 = scmp.eq.s32.totalorder %s20, 0
      %p62 = por %p60, %p61
      %p63 = scmp.ne.s32.totalorder %s51, %s52
      %p64 = scmp.eq.s32.totalorder %s21, 1
      %p65 = por %p63, %p64
      %p67 = scmp.ne.s32.totalorder %s52, %s66
      %p68 = scmp.eq.s32.totalorder %s21, 0
      %p69 = por %p67, %p68
      %s71 = sadd.s32 %s70, 1
      %p74 = scmp.eq.s32.totalorder %s15, 1
      %p75 = scmp.ne.s32.totalorder %s70, %s72
      %p76 = scmp.eq.s32.totalorder %s15, 0
      %p77 = por %p75, %p76
      %p78 = scmp.ne.s32.totalorder %s70, %s72
      %p79 = scmp.eq.s32.totalorder %s20, 1
      %p80 = por %p78, %p79
      %p81 = scmp.ne.s32.totalorder %s72, %s73
      %p82 = scmp.eq.s32.totalorder %s20, 0
      %p83 = por %p81, %p82
      %p84 = scmp.ne.s32.totalorder %s72, %s73
      %p85 = scmp.eq.s32.totalorder %s21, 1
      %p86 = por %p84, %p85
      %p88 = scmp.ne.s32.totalorder %s73, %s87
      %p89 = scmp.eq.s32.totalorder %s21, 0
      %p90 = por %p88, %p89
      %s92 = sadd.s32 %s91, 1
      %p95 = scmp.eq.s32.totalorder %s15, 1
      %p96 = scmp.ne.s32.totalorder %s91, %s93
      %p97 = scmp.eq.s32.totalorder %s15, 0
      %p98 = por %p96, %p97
      %p99 = scmp.ne.s32.totalorder %s91, %s93
      %p100 = scmp.eq.s32.totalorder %s20, 1
      %p101 = por %p99, %p100
      %p102 = scmp.ne.s32.totalorder %s93, %s94
      %p103 = scmp.eq.s32.totalorder %s20, 0
      %p104 = por %p102, %p103
      %p105 = scmp.ne.s32.totalorder %s93, %s94
      %p106 = scmp.eq.s32.totalorder %s21, 1
      %p107 = por %p105, %p106
      %p109 = scmp.ne.s32.totalorder %s94, %s108
      %p110 = scmp.eq.s32.totalorder %s21, 0
      %p111 = por %p109, %p110
      %s113 = sadd.s32 %s112, 1
      %p116 = scmp.eq.s32.totalorder %s15, 1
      %p117 = scmp.ne.s32.totalorder %s112, %s114
      %p118 = scmp.eq.s32.totalorder %s15, 0
      %p119 = por %p117, %p118
      %p120 = scmp.ne.s32.totalorder %s112, %s114
      %p121 = scmp.eq.s32.totalorder %s20, 1
      %p122 = por %p120, %p121
      %p123 = scmp.ne.s32.totalorder %s114, %s115
      %p124 = scmp.eq.s32.totalorder %s20, 0
      %p125 = por %p123, %p124
      %p126 = scmp.ne.s32.totalorder %s114, %s115
      %p127 = scmp.eq.s32.totalorder %s21, 1
      %p128 = por %p126, %p127
      %p130 = scmp.ne.s32.totalorder %s115, %s129
      %p131 = scmp.eq.s32.totalorder %s21, 0
      %p132 = por %p130, %p131
      %s134 = sadd.s32 %s133, 1
      %p137 = scmp.eq.s32.totalorder %s15, 1
      %p138 = scmp.ne.s32.totalorder %s133, %s135
      %p139 = scmp.eq.s32.totalorder %s15, 0
      %p140 = por %p138, %p139
      %p141 = scmp.ne.s32.totalorder %s133, %s135
      %p142 = scmp.eq.s32.totalorder %s20, 1
      %p143 = por %p141, %p142
      %p144 = scmp.ne.s32.totalorder %s135, %s136
      %p145 = scmp.eq.s32.totalorder %s20, 0
      %p146 = por %p144, %p145
      %p147 = scmp.ne.s32.totalorder %s135, %s136
      %p148 = scmp.eq.s32.totalorder %s21, 1
      %p149 = por %p147, %p148
      %p151 = scmp.ne.s32.totalorder %s136, %s150
      %p152 = scmp.eq.s32.totalorder %s21, 0
      %p153 = por %p151, %p152
      %s154 = ssub.s32 %s15, %s22
      %p155 = scmp.eq.s32.totalorder %s154, 0
      %s157 = sadd.s32 %s156, 1
      %s158 = scalar_select %p155, %s156, %s157
      %p161 = pneg %p155
      %p162 = scmp.eq.s32.totalorder %s15, 1
      %p163 = por %p161, %p162
      %p164 = scmp.ne.s32.totalorder %s156, %s159
      %p165 = scmp.eq.s32.totalorder %s15, 0
      %p166 = por %p164, %p165
      %p167 = scmp.ne.s32.totalorder %s156, %s159
      %p168 = scmp.eq.s32.totalorder %s20, 1
      %p169 = por %p167, %p168
      %p170 = scmp.ne.s32.totalorder %s159, %s160
      %p171 = scmp.eq.s32.totalorder %s20, 0
      %p172 = por %p170, %p171
      %p173 = scmp.ne.s32.totalorder %s159, %s160
      %p174 = scmp.eq.s32.totalorder %s21, 1
      %p175 = por %p173, %p174
      %p177 = scmp.ne.s32.totalorder %s160, %s176
      %p178 = scmp.eq.s32.totalorder %s21, 0
      %p179 = por %p177, %p178
      %p180 = scmp.le.s32.totalorder 1, %s15
      %p181 = scmp.lt.s32.totalorder %s15, 3
      %p182 = pnand %p180, %p181
      %p183 = pneg %p182
      // Predicated region
      $region9: #{tpu_custom_call.1} parent=5 // pred_check
        _
      $region10: #{tpu_custom_call.1} parent=5 // pred_check_branch
        %185 = sbr.rel (%p182) target = $region12
      $region11: #{tpu_custom_call.1} parent=5 // pred_region
        %s186 = ssub.s32 %s15, 1
        // Predicated region
        $region13: #{tpu_custom_call.1} parent=11 // pred_check
          %p187 = pneg %p62
        $region14: #{tpu_custom_call.1} parent=11 // pred_check_branch
          %189 = sbr.rel (%p187) target = $region16
        $region15: #{tpu_custom_call.1} parent=11 // pred_region
          _
        $region16: #{tpu_custom_call.1} parent=11 // pred_fallthru
          _
        // Predicated region
        $region17: #{tpu_custom_call.1} parent=11 // pred_check
          %p190 = pneg %p83
        $region18: #{tpu_custom_call.1} parent=11 // pred_check_branch
          %192 = sbr.rel (%p190) target = $region20
        $region19: #{tpu_custom_call.1} parent=11 // pred_region
          _
        $region20: #{tpu_custom_call.1} parent=11 // pred_fallthru
          _
        // Predicated region
        $region21: #{tpu_custom_call.1} parent=11 // pred_check
          %p193 = pneg %p104
        $region22: #{tpu_custom_call.1} parent=11 // pred_check_branch
          %195 = sbr.rel (%p193) target = $region24
        $region23: #{tpu_custom_call.1} parent=11 // pred_region
          _
        $region24: #{tpu_custom_call.1} parent=11 // pred_fallthru
          _
        // Predicated region
        $region25: #{tpu_custom_call.1} parent=11 // pred_check
          %p196 = pneg %p125
        $region26: #{tpu_custom_call.1} parent=11 // pred_check_branch
          %198 = sbr.rel (%p196) target = $region28
        $region27: #{tpu_custom_call.1} parent=11 // pred_region
          _
        $region28: #{tpu_custom_call.1} parent=11 // pred_fallthru
          _
        // Predicated region
        $region29: #{tpu_custom_call.1} parent=11 // pred_check
          %p199 = pneg %p146
        $region30: #{tpu_custom_call.1} parent=11 // pred_check_branch
          %201 = sbr.rel (%p199) target = $region32
        $region31: #{tpu_custom_call.1} parent=11 // pred_region
          _
        $region32: #{tpu_custom_call.1} parent=11 // pred_fallthru
          _
      $region12: #{tpu_custom_call.1} parent=5 // pred_fallthru
        _
      %p202 = scmp.lt.s32.totalorder %s15, 2
      // Predicated region
      $region33: #{tpu_custom_call.1} parent=5 // pred_check
        %p203 = pneg %p202
      $region34: #{tpu_custom_call.1} parent=5 // pred_check_branch
        %205 = sbr.rel (%p203) target = $region36
      $region35: #{tpu_custom_call.1} parent=5 // pred_region
        // Predicated region
        $region37: #{tpu_custom_call.1} parent=35 // pred_check
          %p206 = pneg %p35
        $region38: #{tpu_custom_call.1} parent=35 // pred_check_branch
          %208 = sbr.rel (%p206) target = $region40
        $region39: #{tpu_custom_call.1} parent=35 // pred_region
          %p209 = scmp.lt.s32.totalorder %s15, 1
          %s210 = scalar_select %p209, %s15, 1
          %s211 = smul.addr %s210, 46
          %s212 = smul.addr %s211, 8
          %s213 = scalar_lea.vmem %s0, %s212
        $region40: #{tpu_custom_call.1} parent=35 // pred_fallthru
          _
      $region36: #{tpu_custom_call.1} parent=5 // pred_fallthru
        _
      %p214 = scmp.le.s32.totalorder 1, %s15
      %p215 = scmp.lt.s32.totalorder %s15, 3
      %p216 = pnand %p214, %p215
      %p217 = pneg %p216
      // Predicated region
      $region41: #{tpu_custom_call.1} parent=5 // pred_check
        _
      $region42: #{tpu_custom_call.1} parent=5 // pred_check_branch
        %219 = sbr.rel (%p216) target = $region44
      $region43: #{tpu_custom_call.1} parent=5 // pred_region
        %s220 = ssub.s32 %s15, 1
        %p221 = scmp.lt.s32.totalorder %s20, 1
        %s222 = scalar_select %p221, %s20, 1
        %s223 = smul.addr %s222, 46
        %s224 = smul.addr %s223, 8
        %s225 = scalar_lea.vmem %s0, %s224
        %p226 = pneg %p41
        %p227 = pneg %p38
        %p228 = pneg %p62
        %p229 = pneg %p59
        %p230 = pneg %p83
        %p231 = pneg %p80
        %p232 = pneg %p104
        %p233 = pneg %p101
        %p234 = pneg %p125
        %p235 = pneg %p122
        %p236 = pneg %p146
        %p237 = pneg %p143
        %p238 = pneg %p172
        %p239 = pneg %p169
        %s240 = sand.u32 %s159, 1
        %s241 = scalar_lea.sflag [#allocation3], %s240
        %s242 = sand.u32 %s159, 1
        %s243 = smul.addr %s242, 16
        %s244 = scalar_lea.vmem [#allocation2], %s243
        %p245 = scmp.lt.s32.totalorder %s20, 1
        %s246 = scalar_select %p245, %s20, 1
        %s247 = smul.addr %s246, 46
        %s248 = smul.addr %s247, 8
        %s249 = scalar_lea.vmem %s0, %s248
        %v251 = vld [vmem:[%s249] sm:$0xff]
        %v252 = vld [vmem:[%s249 + $0x8] sm:$0xff]
        %v253 = vld [vmem:[%s249 + $0x10] sm:$0xff]
        %v254 = vld [vmem:[%s249 + $0x18] sm:$0xff]
        %v255 = vld [vmem:[%s249 + $0x20] sm:$0xff]
        %v256 = vld [vmem:[%s249 + $0x28] sm:$0xff]
        %v257 = vld [vmem:[%s249 + $0x30] sm:$0xff]
        %v258 = vld [vmem:[%s249 + $0x38] sm:$0xff]
        %v259 = vld [vmem:[%s249 + $0x40] sm:$0xff]
        %v260 = vld [vmem:[%s249 + $0x48] sm:$0xff]
        %v261 = vld [vmem:[%s249 + $0x50] sm:$0xff]
        %v262 = vld [vmem:[%s249 + $0x58] sm:$0xff]
        %v263 = vld [vmem:[%s249 + $0x60] sm:$0xff]
        %v264 = vld [vmem:[%s249 + $0x68] sm:$0xff]
        %v265 = vld [vmem:[%s249 + $0x70] sm:$0xff]
        %v266 = vld [vmem:[%s249 + $0x78] sm:$0xff]
        %v267 = vld [vmem:[%s249 + $0x80] sm:$0xff]
        %v268 = vld [vmem:[%s249 + $0x88] sm:$0xff]
        %v269 = vld [vmem:[%s249 + $0x90] sm:$0xff]
        %v270 = vld [vmem:[%s249 + $0x98] sm:$0xff]
        %v271 = vld [vmem:[%s249 + $0xa0] sm:$0xff]
        %v272 = vld [vmem:[%s249 + $0xa8] sm:$0xff]
        %v273 = vld [vmem:[%s249 + $0xb0] sm:$0xff]
        %v274 = vld [vmem:[%s249 + $0xb8] sm:$0xff]
        %v275 = vld [vmem:[%s249 + $0xc0] sm:$0xff]
        %v276 = vld [vmem:[%s249 + $0xc8] sm:$0xff]
        %v277 = vld [vmem:[%s249 + $0xd0] sm:$0xff]
        %v278 = vld [vmem:[%s249 + $0xd8] sm:$0xff]
        %v279 = vld [vmem:[%s249 + $0xe0] sm:$0xff]
        %v280 = vld [vmem:[%s249 + $0xe8] sm:$0xff]
        %v281 = vld [vmem:[%s249 + $0xf0] sm:$0xff]
        %v282 = vld [vmem:[%s249 + $0xf8] sm:$0xff]
        %v283 = vld [vmem:[%s249 + $0x100] sm:$0xff]
        %v284 = vld [vmem:[%s249 + $0x108] sm:$0xff]
        %v285 = vld [vmem:[%s249 + $0x110] sm:$0xff]
        %v286 = vld [vmem:[%s249 + $0x118] sm:$0xff]
        %v287 = vld [vmem:[%s249 + $0x120] sm:$0xff]
        %v288 = vld [vmem:[%s249 + $0x128] sm:$0xff]
        %v289 = vld [vmem:[%s249 + $0x130] sm:$0xff]
        %v290 = vld [vmem:[%s249 + $0x138] sm:$0xff]
        %v291 = vld [vmem:[%s249 + $0x140] sm:$0xff]
        %v292 = vld [vmem:[%s249 + $0x148] sm:$0xff]
        %v293 = vld [vmem:[%s249 + $0x150] sm:$0xff]
        %v294 = vld [vmem:[%s249 + $0x158] sm:$0xff]
        %v295 = vld [vmem:[%s249 + $0x160] sm:$0xff]
        %v296 = vld [vmem:[%s249 + $0x168] sm:$0xff]
        %vm339 = vcmask 1046528
        %v340 = vrot.slane %v251, 1
        %v341 = vrot.slane %v252, 1
        %v342 = vsel %vm339, %v340, %v341
        %v343 = vrot.slane %v253, 1
        %v344 = vsel %vm339, %v341, %v343
        %v345 = vrot.slane %v254, 1
        %v346 = vsel %vm339, %v343, %v345
        %v347 = vrot.slane %v255, 1
        %v348 = vsel %vm339, %v345, %v347
        %v349 = vrot.slane %v256, 1
        %v350 = vsel %vm339, %v347, %v349
        %v351 = vrot.slane %v257, 1
        %v352 = vsel %vm339, %v349, %v351
        %v353 = vrot.slane %v258, 1
        %v354 = vsel %vm339, %v351, %v353
        %v355 = vrot.slane %v259, 1
        %v356 = vsel %vm339, %v353, %v355
        %v357 = vrot.slane %v260, 1
        %v358 = vsel %vm339, %v355, %v357
        %v359 = vrot.slane %v261, 1
        %v360 = vsel %vm339, %v357, %v359
        %v361 = vrot.slane %v262, 1
        %v362 = vsel %vm339, %v359, %v361
        %v363 = vrot.slane %v263, 1
        %v364 = vsel %vm339, %v361, %v363
        %v365 = vrot.slane %v264, 1
        %v366 = vsel %vm339, %v363, %v365
        %v367 = vrot.slane %v265, 1
        %v368 = vsel %vm339, %v365, %v367
        %v369 = vrot.slane %v266, 1
        %v370 = vsel %vm339, %v367, %v369
        %v371 = vrot.slane %v267, 1
        %v372 = vsel %vm339, %v369, %v371
        %v373 = vrot.slane %v268, 1
        %v374 = vsel %vm339, %v371, %v373
        %v375 = vrot.slane %v269, 1
        %v376 = vsel %vm339, %v373, %v375
        %v377 = vrot.slane %v270, 1
        %v378 = vsel %vm339, %v375, %v377
        %v379 = vrot.slane %v271, 1
        %v380 = vsel %vm339, %v377, %v379
        %v381 = vrot.slane %v272, 1
        %v382 = vsel %vm339, %v379, %v381
        %v383 = vrot.slane %v273, 1
        %v384 = vsel %vm339, %v381, %v383
        %v385 = vrot.slane %v274, 1
        %v386 = vsel %vm339, %v383, %v385
        %v387 = vrot.slane %v275, 1
        %v388 = vsel %vm339, %v385, %v387
        %v389 = vrot.slane %v276, 1
        %v390 = vsel %vm339, %v387, %v389
        %v391 = vrot.slane %v277, 1
        %v392 = vsel %vm339, %v389, %v391
        %v393 = vrot.slane %v278, 1
        %v394 = vsel %vm339, %v391, %v393
        %v395 = vrot.slane %v279, 1
        %v396 = vsel %vm339, %v393, %v395
        %v397 = vrot.slane %v280, 1
        %v398 = vsel %vm339, %v395, %v397
        %v399 = vrot.slane %v281, 1
        %v400 = vsel %vm339, %v397, %v399
        %v401 = vrot.slane %v282, 1
        %v402 = vsel %vm339, %v399, %v401
        %v403 = vrot.slane %v283, 1
        %v404 = vsel %vm339, %v401, %v403
        %v405 = vrot.slane %v284, 1
        %v406 = vsel %vm339, %v403, %v405
        %v407 = vrot.slane %v285, 1
        %v408 = vsel %vm339, %v405, %v407
        %v409 = vrot.slane %v286, 1
        %v410 = vsel %vm339, %v407, %v409
        %v411 = vrot.slane %v287, 1
        %v412 = vsel %vm339, %v409, %v411
        %v413 = vrot.slane %v288, 1
        %v414 = vsel %vm339, %v411, %v413
        %v415 = vrot.slane %v289, 1
        %v416 = vsel %vm339, %v413, %v415
        %v417 = vrot.slane %v290, 1
        %v418 = vsel %vm339, %v415, %v417
        %v419 = vrot.slane %v291, 1
        %v420 = vsel %vm339, %v417, %v419
        %v421 = vrot.slane %v292, 1
        %v422 = vsel %vm339, %v419, %v421
        %423 = vrot.lane.b32.xlu0 %v342, 4
        %v424 = vpop.permute.xlu0 %423
        %425 = vrot.lane.b32.xlu0 %v344, 4
        %v426 = vpop.permute.xlu0 %425
        %427 = vrot.lane.b32.xlu0 %v346, 4
        %v428 = vpop.permute.xlu0 %427
        %429 = vrot.lane.b32.xlu0 %v348, 4
        %v430 = vpop.permute.xlu0 %429
        %431 = vrot.lane.b32.xlu0 %v350, 4
        %v432 = vpop.permute.xlu0 %431
        %433 = vrot.lane.b32.xlu0 %v352, 4
        %v434 = vpop.permute.xlu0 %433
        %435 = vrot.lane.b32.xlu0 %v354, 4
        %v436 = vpop.permute.xlu0 %435
        %437 = vrot.lane.b32.xlu0 %v356, 4
        %v438 = vpop.permute.xlu0 %437
        %439 = vrot.lane.b32.xlu0 %v358, 4
        %v440 = vpop.permute.xlu0 %439
        %441 = vrot.lane.b32.xlu0 %v360, 4
        %v442 = vpop.permute.xlu0 %441
        %443 = vrot.lane.b32.xlu0 %v362, 4
        %v444 = vpop.permute.xlu0 %443
        %445 = vrot.lane.b32.xlu0 %v364, 4
        %v446 = vpop.permute.xlu0 %445
        %447 = vrot.lane.b32.xlu0 %v366, 4
        %v448 = vpop.permute.xlu0 %447
        %449 = vrot.lane.b32.xlu0 %v368, 4
        %v450 = vpop.permute.xlu0 %449
        %451 = vrot.lane.b32.xlu0 %v370, 4
        %v452 = vpop.permute.xlu0 %451
        %453 = vrot.lane.b32.xlu0 %v372, 4
        %v454 = vpop.permute.xlu0 %453
        %455 = vrot.lane.b32.xlu0 %v374, 4
        %v456 = vpop.permute.xlu0 %455
        %457 = vrot.lane.b32.xlu0 %v376, 4
        %v458 = vpop.permute.xlu0 %457
        %459 = vrot.lane.b32.xlu0 %v378, 4
        %v460 = vpop.permute.xlu0 %459
        %461 = vrot.lane.b32.xlu0 %v380, 4
        %v462 = vpop.permute.xlu0 %461
        %463 = vrot.lane.b32.xlu0 %v382, 4
        %v464 = vpop.permute.xlu0 %463
        %465 = vrot.lane.b32.xlu0 %v384, 4
        %v466 = vpop.permute.xlu0 %465
        %467 = vrot.lane.b32.xlu0 %v386, 4
        %v468 = vpop.permute.xlu0 %467
        %469 = vrot.lane.b32.xlu0 %v388, 4
        %v470 = vpop.permute.xlu0 %469
        %471 = vrot.lane.b32.xlu0 %v390, 4
        %v472 = vpop.permute.xlu0 %471
        %473 = vrot.lane.b32.xlu0 %v392, 4
        %v474 = vpop.permute.xlu0 %473
        %475 = vrot.lane.b32.xlu0 %v394, 4
        %v476 = vpop.permute.xlu0 %475
        %477 = vrot.lane.b32.xlu0 %v396, 4
        %v478 = vpop.permute.xlu0 %477
        %479 = vrot.lane.b32.xlu0 %v398, 4
        %v480 = vpop.permute.xlu0 %479
        %481 = vrot.lane.b32.xlu0 %v400, 4
        %v482 = vpop.permute.xlu0 %481
        %483 = vrot.lane.b32.xlu0 %v402, 4
        %v484 = vpop.permute.xlu0 %483
        %485 = vrot.lane.b32.xlu0 %v404, 4
        %v486 = vpop.permute.xlu0 %485
        %487 = vrot.lane.b32.xlu0 %v406, 4
        %v488 = vpop.permute.xlu0 %487
        %489 = vrot.lane.b32.xlu0 %v408, 4
        %v490 = vpop.permute.xlu0 %489
        %491 = vrot.lane.b32.xlu0 %v410, 4
        %v492 = vpop.permute.xlu0 %491
        %493 = vrot.lane.b32.xlu0 %v412, 4
        %v494 = vpop.permute.xlu0 %493
        %495 = vrot.lane.b32.xlu0 %v414, 4
        %v496 = vpop.permute.xlu0 %495
        %497 = vrot.lane.b32.xlu0 %v416, 4
        %v498 = vpop.permute.xlu0 %497
        %499 = vrot.lane.b32.xlu0 %v418, 4
        %v500 = vpop.permute.xlu0 %499
        %501 = vrot.lane.b32.xlu0 %v420, 4
        %v502 = vpop.permute.xlu0 %501
        %503 = vrot.lane.b32.xlu0 %v422, 4
        %v504 = vpop.permute.xlu0 %503
        %vm546 = vcmask 1045504
        %v547 = vrot.slane %v251, 2
        %v548 = vrot.slane %v252, 2
        %v549 = vsel %vm546, %v547, %v548
        %v550 = vrot.slane %v253, 2
        %v551 = vsel %vm546, %v548, %v550
        %v552 = vrot.slane %v254, 2
        %v553 = vsel %vm546, %v550, %v552
        %v554 = vrot.slane %v255, 2
        %v555 = vsel %vm546, %v552, %v554
        %v556 = vrot.slane %v256, 2
        %v557 = vsel %vm546, %v554, %v556
        %v558 = vrot.slane %v257, 2
        %v559 = vsel %vm546, %v556, %v558
        %v560 = vrot.slane %v258, 2
        %v561 = vsel %vm546, %v558, %v560
        %v562 = vrot.slane %v259, 2
        %v563 = vsel %vm546, %v560, %v562
        %v564 = vrot.slane %v260, 2
        %v565 = vsel %vm546, %v562, %v564
        %v566 = vrot.slane %v261, 2
        %v567 = vsel %vm546, %v564, %v566
        %v568 = vrot.slane %v262, 2
        %v569 = vsel %vm546, %v566, %v568
        %v570 = vrot.slane %v263, 2
        %v571 = vsel %vm546, %v568, %v570
        %v572 = vrot.slane %v264, 2
        %v573 = vsel %vm546, %v570, %v572
        %v574 = vrot.slane %v265, 2
        %v575 = vsel %vm546, %v572, %v574
        %v576 = vrot.slane %v266, 2
        %v577 = vsel %vm546, %v574, %v576
        %v578 = vrot.slane %v267, 2
        %v579 = vsel %vm546, %v576, %v578
        %v580 = vrot.slane %v268, 2
        %v581 = vsel %vm546, %v578, %v580
        %v582 = vrot.slane %v269, 2
        %v583 = vsel %vm546, %v580, %v582
        %v584 = vrot.slane %v270, 2
        %v585 = vsel %vm546, %v582, %v584
        %v586 = vrot.slane %v271, 2
        %v587 = vsel %vm546, %v584, %v586
        %v588 = vrot.slane %v272, 2
        %v589 = vsel %vm546, %v586, %v588
        %v590 = vrot.slane %v273, 2
        %v591 = vsel %vm546, %v588, %v590
        %v592 = vrot.slane %v274, 2
        %v593 = vsel %vm546, %v590, %v592
        %v594 = vrot.slane %v275, 2
        %v595 = vsel %vm546, %v592, %v594
        %v596 = vrot.slane %v276, 2
        %v597 = vsel %vm546, %v594, %v596
        %v598 = vrot.slane %v277, 2
        %v599 = vsel %vm546, %v596, %v598
        %v600 = vrot.slane %v278, 2
        %v601 = vsel %vm546, %v598, %v600
        %v602 = vrot.slane %v279, 2
        %v603 = vsel %vm546, %v600, %v602
        %v604 = vrot.slane %v280, 2
        %v605 = vsel %vm546, %v602, %v604
        %v606 = vrot.slane %v281, 2
        %v607 = vsel %vm546, %v604, %v606
        %v608 = vrot.slane %v282, 2
        %v609 = vsel %vm546, %v606, %v608
        %v610 = vrot.slane %v283, 2
        %v611 = vsel %vm546, %v608, %v610
        %v612 = vrot.slane %v284, 2
        %v613 = vsel %vm546, %v610, %v612
        %v614 = vrot.slane %v285, 2
        %v615 = vsel %vm546, %v612, %v614
        %v616 = vrot.slane %v286, 2
        %v617 = vsel %vm546, %v614, %v616
        %v618 = vrot.slane %v287, 2
        %v619 = vsel %vm546, %v616, %v618
        %v620 = vrot.slane %v288, 2
        %v621 = vsel %vm546, %v618, %v620
        %v622 = vrot.slane %v289, 2
        %v623 = vsel %vm546, %v620, %v622
        %v624 = vrot.slane %v290, 2
        %v625 = vsel %vm546, %v622, %v624
        %v626 = vrot.slane %v291, 2
        %v627 = vsel %vm546, %v624, %v626
        %v628 = vrot.slane %v292, 2
        %v629 = vsel %vm546, %v626, %v628
        %630 = vrot.lane.b32.xlu0 %v549, 8
        %v631 = vpop.permute.xlu0 %630
        %632 = vrot.lane.b32.xlu0 %v551, 8
        %v633 = vpop.permute.xlu0 %632
        %634 = vrot.lane.b32.xlu0 %v553, 8
        %v635 = vpop.permute.xlu0 %634
        %636 = vrot.lane.b32.xlu0 %v555, 8
        %v637 = vpop.permute.xlu0 %636
        %638 = vrot.lane.b32.xlu0 %v557, 8
        %v639 = vpop.permute.xlu0 %638
        %640 = vrot.lane.b32.xlu0 %v559, 8
        %v641 = vpop.permute.xlu0 %640
        %642 = vrot.lane.b32.xlu0 %v561, 8
        %v643 = vpop.permute.xlu0 %642
        %644 = vrot.lane.b32.xlu0 %v563, 8
        %v645 = vpop.permute.xlu0 %644
        %646 = vrot.lane.b32.xlu0 %v565, 8
        %v647 = vpop.permute.xlu0 %646
        %648 = vrot.lane.b32.xlu0 %v567, 8
        %v649 = vpop.permute.xlu0 %648
        %650 = vrot.lane.b32.xlu0 %v569, 8
        %v651 = vpop.permute.xlu0 %650
        %652 = vrot.lane.b32.xlu0 %v571, 8
        %v653 = vpop.permute.xlu0 %652
        %654 = vrot.lane.b32.xlu0 %v573, 8
        %v655 = vpop.permute.xlu0 %654
        %656 = vrot.lane.b32.xlu0 %v575, 8
        %v657 = vpop.permute.xlu0 %656
        %658 = vrot.lane.b32.xlu0 %v577, 8
        %v659 = vpop.permute.xlu0 %658
        %660 = vrot.lane.b32.xlu0 %v579, 8
        %v661 = vpop.permute.xlu0 %660
        %662 = vrot.lane.b32.xlu0 %v581, 8
        %v663 = vpop.permute.xlu0 %662
        %664 = vrot.lane.b32.xlu0 %v583, 8
        %v665 = vpop.permute.xlu0 %664
        %666 = vrot.lane.b32.xlu0 %v585, 8
        %v667 = vpop.permute.xlu0 %666
        %668 = vrot.lane.b32.xlu0 %v587, 8
        %v669 = vpop.permute.xlu0 %668
        %670 = vrot.lane.b32.xlu0 %v589, 8
        %v671 = vpop.permute.xlu0 %670
        %672 = vrot.lane.b32.xlu0 %v591, 8
        %v673 = vpop.permute.xlu0 %672
        %674 = vrot.lane.b32.xlu0 %v593, 8
        %v675 = vpop.permute.xlu0 %674
        %676 = vrot.lane.b32.xlu0 %v595, 8
        %v677 = vpop.permute.xlu0 %676
        %678 = vrot.lane.b32.xlu0 %v597, 8
        %v679 = vpop.permute.xlu0 %678
        %680 = vrot.lane.b32.xlu0 %v599, 8
        %v681 = vpop.permute.xlu0 %680
        %682 = vrot.lane.b32.xlu0 %v601, 8
        %v683 = vpop.permute.xlu0 %682
        %684 = vrot.lane.b32.xlu0 %v603, 8
        %v685 = vpop.permute.xlu0 %684
        %686 = vrot.lane.b32.xlu0 %v605, 8
        %v687 = vpop.permute.xlu0 %686
        %688 = vrot.lane.b32.xlu0 %v607, 8
        %v689 = vpop.permute.xlu0 %688
        %690 = vrot.lane.b32.xlu0 %v609, 8
        %v691 = vpop.permute.xlu0 %690
        %692 = vrot.lane.b32.xlu0 %v611, 8
        %v693 = vpop.permute.xlu0 %692
        %694 = vrot.lane.b32.xlu0 %v613, 8
        %v695 = vpop.permute.xlu0 %694
        %696 = vrot.lane.b32.xlu0 %v615, 8
        %v697 = vpop.permute.xlu0 %696
        %698 = vrot.lane.b32.xlu0 %v617, 8
        %v699 = vpop.permute.xlu0 %698
        %700 = vrot.lane.b32.xlu0 %v619, 8
        %v701 = vpop.permute.xlu0 %700
        %702 = vrot.lane.b32.xlu0 %v621, 8
        %v703 = vpop.permute.xlu0 %702
        %704 = vrot.lane.b32.xlu0 %v623, 8
        %v705 = vpop.permute.xlu0 %704
        %706 = vrot.lane.b32.xlu0 %v625, 8
        %v707 = vpop.permute.xlu0 %706
        %708 = vrot.lane.b32.xlu0 %v627, 8
        %v709 = vpop.permute.xlu0 %708
        %710 = vrot.lane.b32.xlu0 %v629, 8
        %v711 = vpop.permute.xlu0 %710
        %v755 = vrot.slane %v293, 2
        %v756 = vsel %vm546, %v628, %v755
        %v757 = vrot.slane %v294, 2
        %v758 = vsel %vm546, %v755, %v757
        %759 = vrot.lane.b32.xlu0 %v553, 12
        %v760 = vpop.permute.xlu0 %759
        %761 = vrot.lane.b32.xlu0 %v555, 12
        %v762 = vpop.permute.xlu0 %761
        %763 = vrot.lane.b32.xlu0 %v557, 12
        %v764 = vpop.permute.xlu0 %763
        %765 = vrot.lane.b32.xlu0 %v559, 12
        %v766 = vpop.permute.xlu0 %765
        %767 = vrot.lane.b32.xlu0 %v561, 12
        %v768 = vpop.permute.xlu0 %767
        %769 = vrot.lane.b32.xlu0 %v563, 12
        %v770 = vpop.permute.xlu0 %769
        %771 = vrot.lane.b32.xlu0 %v565, 12
        %v772 = vpop.permute.xlu0 %771
        %773 = vrot.lane.b32.xlu0 %v567, 12
        %v774 = vpop.permute.xlu0 %773
        %775 = vrot.lane.b32.xlu0 %v569, 12
        %v776 = vpop.permute.xlu0 %775
        %777 = vrot.lane.b32.xlu0 %v571, 12
        %v778 = vpop.permute.xlu0 %777
        %779 = vrot.lane.b32.xlu0 %v573, 12
        %v780 = vpop.permute.xlu0 %779
        %781 = vrot.lane.b32.xlu0 %v575, 12
        %v782 = vpop.permute.xlu0 %781
        %783 = vrot.lane.b32.xlu0 %v577, 12
        %v784 = vpop.permute.xlu0 %783
        %785 = vrot.lane.b32.xlu0 %v579, 12
        %v786 = vpop.permute.xlu0 %785
        %787 = vrot.lane.b32.xlu0 %v581, 12
        %v788 = vpop.permute.xlu0 %787
        %789 = vrot.lane.b32.xlu0 %v583, 12
        %v790 = vpop.permute.xlu0 %789
        %791 = vrot.lane.b32.xlu0 %v585, 12
        %v792 = vpop.permute.xlu0 %791
        %793 = vrot.lane.b32.xlu0 %v587, 12
        %v794 = vpop.permute.xlu0 %793
        %795 = vrot.lane.b32.xlu0 %v589, 12
        %v796 = vpop.permute.xlu0 %795
        %797 = vrot.lane.b32.xlu0 %v591, 12
        %v798 = vpop.permute.xlu0 %797
        %799 = vrot.lane.b32.xlu0 %v593, 12
        %v800 = vpop.permute.xlu0 %799
        %801 = vrot.lane.b32.xlu0 %v595, 12
        %v802 = vpop.permute.xlu0 %801
        %803 = vrot.lane.b32.xlu0 %v597, 12
        %v804 = vpop.permute.xlu0 %803
        %805 = vrot.lane.b32.xlu0 %v599, 12
        %v806 = vpop.permute.xlu0 %805
        %807 = vrot.lane.b32.xlu0 %v601, 12
        %v808 = vpop.permute.xlu0 %807
        %809 = vrot.lane.b32.xlu0 %v603, 12
        %v810 = vpop.permute.xlu0 %809
        %811 = vrot.lane.b32.xlu0 %v605, 12
        %v812 = vpop.permute.xlu0 %811
        %813 = vrot.lane.b32.xlu0 %v607, 12
        %v814 = vpop.permute.xlu0 %813
        %815 = vrot.lane.b32.xlu0 %v609, 12
        %v816 = vpop.permute.xlu0 %815
        %817 = vrot.lane.b32.xlu0 %v611, 12
        %v818 = vpop.permute.xlu0 %817
        %819 = vrot.lane.b32.xlu0 %v613, 12
        %v820 = vpop.permute.xlu0 %819
        %821 = vrot.lane.b32.xlu0 %v615, 12
        %v822 = vpop.permute.xlu0 %821
        %823 = vrot.lane.b32.xlu0 %v617, 12
        %v824 = vpop.permute.xlu0 %823
        %825 = vrot.lane.b32.xlu0 %v619, 12
        %v826 = vpop.permute.xlu0 %825
        %827 = vrot.lane.b32.xlu0 %v621, 12
        %v828 = vpop.permute.xlu0 %827
        %829 = vrot.lane.b32.xlu0 %v623, 12
        %v830 = vpop.permute.xlu0 %829
        %831 = vrot.lane.b32.xlu0 %v625, 12
        %v832 = vpop.permute.xlu0 %831
        %833 = vrot.lane.b32.xlu0 %v627, 12
        %v834 = vpop.permute.xlu0 %833
        %835 = vrot.lane.b32.xlu0 %v629, 12
        %v836 = vpop.permute.xlu0 %835
        %837 = vrot.lane.b32.xlu0 %v756, 12
        %v838 = vpop.permute.xlu0 %837
        %839 = vrot.lane.b32.xlu0 %v758, 12
        %v840 = vpop.permute.xlu0 %839
        %vm882 = vcmask 1044480
        %v883 = vrot.slane %v253, 3
        %v884 = vrot.slane %v254, 3
        %v885 = vsel %vm882, %v883, %v884
        %v886 = vrot.slane %v255, 3
        %v887 = vsel %vm882, %v884, %v886
        %v888 = vrot.slane %v256, 3
        %v889 = vsel %vm882, %v886, %v888
        %v890 = vrot.slane %v257, 3
        %v891 = vsel %vm882, %v888, %v890
        %v892 = vrot.slane %v258, 3
        %v893 = vsel %vm882, %v890, %v892
        %v894 = vrot.slane %v259, 3
        %v895 = vsel %vm882, %v892, %v894
        %v896 = vrot.slane %v260, 3
        %v897 = vsel %vm882, %v894, %v896
        %v898 = vrot.slane %v261, 3
        %v899 = vsel %vm882, %v896, %v898
        %v900 = vrot.slane %v262, 3
        %v901 = vsel %vm882, %v898, %v900
        %v902 = vrot.slane %v263, 3
        %v903 = vsel %vm882, %v900, %v902
        %v904 = vrot.slane %v264, 3
        %v905 = vsel %vm882, %v902, %v904
        %v906 = vrot.slane %v265, 3
        %v907 = vsel %vm882, %v904, %v906
        %v908 = vrot.slane %v266, 3
        %v909 = vsel %vm882, %v906, %v908
        %v910 = vrot.slane %v267, 3
        %v911 = vsel %vm882, %v908, %v910
        %v912 = vrot.slane %v268, 3
        %v913 = vsel %vm882, %v910, %v912
        %v914 = vrot.slane %v269, 3
        %v915 = vsel %vm882, %v912, %v914
        %v916 = vrot.slane %v270, 3
        %v917 = vsel %vm882, %v914, %v916
        %v918 = vrot.slane %v271, 3
        %v919 = vsel %vm882, %v916, %v918
        %v920 = vrot.slane %v272, 3
        %v921 = vsel %vm882, %v918, %v920
        %v922 = vrot.slane %v273, 3
        %v923 = vsel %vm882, %v920, %v922
        %v924 = vrot.slane %v274, 3
        %v925 = vsel %vm882, %v922, %v924
        %v926 = vrot.slane %v275, 3
        %v927 = vsel %vm882, %v924, %v926
        %v928 = vrot.slane %v276, 3
        %v929 = vsel %vm882, %v926, %v928
        %v930 = vrot.slane %v277, 3
        %v931 = vsel %vm882, %v928, %v930
        %v932 = vrot.slane %v278, 3
        %v933 = vsel %vm882, %v930, %v932
        %v934 = vrot.slane %v279, 3
        %v935 = vsel %vm882, %v932, %v934
        %v936 = vrot.slane %v280, 3
        %v937 = vsel %vm882, %v934, %v936
        %v938 = vrot.slane %v281, 3
        %v939 = vsel %vm882, %v936, %v938
        %v940 = vrot.slane %v282, 3
        %v941 = vsel %vm882, %v938, %v940
        %v942 = vrot.slane %v283, 3
        %v943 = vsel %vm882, %v940, %v942
        %v944 = vrot.slane %v284, 3
        %v945 = vsel %vm882, %v942, %v944
        %v946 = vrot.slane %v285, 3
        %v947 = vsel %vm882, %v944, %v946
        %v948 = vrot.slane %v286, 3
        %v949 = vsel %vm882, %v946, %v948
        %v950 = vrot.slane %v287, 3
        %v951 = vsel %vm882, %v948, %v950
        %v952 = vrot.slane %v288, 3
        %v953 = vsel %vm882, %v950, %v952
        %v954 = vrot.slane %v289, 3
        %v955 = vsel %vm882, %v952, %v954
        %v956 = vrot.slane %v290, 3
        %v957 = vsel %vm882, %v954, %v956
        %v958 = vrot.slane %v291, 3
        %v959 = vsel %vm882, %v956, %v958
        %v960 = vrot.slane %v292, 3
        %v961 = vsel %vm882, %v958, %v960
        %v962 = vrot.slane %v293, 3
        %v963 = vsel %vm882, %v960, %v962
        %v964 = vrot.slane %v294, 3
        %v965 = vsel %vm882, %v962, %v964
        %966 = vrot.lane.b32.xlu0 %v885, 16
        %v967 = vpop.permute.xlu0 %966
        %968 = vrot.lane.b32.xlu0 %v887, 16
        %v969 = vpop.permute.xlu0 %968
        %970 = vrot.lane.b32.xlu0 %v889, 16
        %v971 = vpop.permute.xlu0 %970
        %972 = vrot.lane.b32.xlu0 %v891, 16
        %v973 = vpop.permute.xlu0 %972
        %974 = vrot.lane.b32.xlu0 %v893, 16
        %v975 = vpop.permute.xlu0 %974
        %976 = vrot.lane.b32.xlu0 %v895, 16
        %v977 = vpop.permute.xlu0 %976
        %978 = vrot.lane.b32.xlu0 %v897, 16
        %v979 = vpop.permute.xlu0 %978
        %980 = vrot.lane.b32.xlu0 %v899, 16
        %v981 = vpop.permute.xlu0 %980
        %982 = vrot.lane.b32.xlu0 %v901, 16
        %v983 = vpop.permute.xlu0 %982
        %984 = vrot.lane.b32.xlu0 %v903, 16
        %v985 = vpop.permute.xlu0 %984
        %986 = vrot.lane.b32.xlu0 %v905, 16
        %v987 = vpop.permute.xlu0 %986
        %988 = vrot.lane.b32.xlu0 %v907, 16
        %v989 = vpop.permute.xlu0 %988
        %990 = vrot.lane.b32.xlu0 %v909, 16
        %v991 = vpop.permute.xlu0 %990
        %992 = vrot.lane.b32.xlu0 %v911, 16
        %v993 = vpop.permute.xlu0 %992
        %994 = vrot.lane.b32.xlu0 %v913, 16
        %v995 = vpop.permute.xlu0 %994
        %996 = vrot.lane.b32.xlu0 %v915, 16
        %v997 = vpop.permute.xlu0 %996
        %998 = vrot.lane.b32.xlu0 %v917, 16
        %v999 = vpop.permute.xlu0 %998
        %1000 = vrot.lane.b32.xlu0 %v919, 16
        %v1001 = vpop.permute.xlu0 %1000
        %1002 = vrot.lane.b32.xlu0 %v921, 16
        %v1003 = vpop.permute.xlu0 %1002
        %1004 = vrot.lane.b32.xlu0 %v923, 16
        %v1005 = vpop.permute.xlu0 %1004
        %1006 = vrot.lane.b32.xlu0 %v925, 16
        %v1007 = vpop.permute.xlu0 %1006
        %1008 = vrot.lane.b32.xlu0 %v927, 16
        %v1009 = vpop.permute.xlu0 %1008
        %1010 = vrot.lane.b32.xlu0 %v929, 16
        %v1011 = vpop.permute.xlu0 %1010
        %1012 = vrot.lane.b32.xlu0 %v931, 16
        %v1013 = vpop.permute.xlu0 %1012
        %1014 = vrot.lane.b32.xlu0 %v933, 16
        %v1015 = vpop.permute.xlu0 %1014
        %1016 = vrot.lane.b32.xlu0 %v935, 16
        %v1017 = vpop.permute.xlu0 %1016
        %1018 = vrot.lane.b32.xlu0 %v937, 16
        %v1019 = vpop.permute.xlu0 %1018
        %1020 = vrot.lane.b32.xlu0 %v939, 16
        %v1021 = vpop.permute.xlu0 %1020
        %1022 = vrot.lane.b32.xlu0 %v941, 16
        %v1023 = vpop.permute.xlu0 %1022
        %1024 = vrot.lane.b32.xlu0 %v943, 16
        %v1025 = vpop.permute.xlu0 %1024
        %1026 = vrot.lane.b32.xlu0 %v945, 16
        %v1027 = vpop.permute.xlu0 %1026
        %1028 = vrot.lane.b32.xlu0 %v947, 16
        %v1029 = vpop.permute.xlu0 %1028
        %1030 = vrot.lane.b32.xlu0 %v949, 16
        %v1031 = vpop.permute.xlu0 %1030
        %1032 = vrot.lane.b32.xlu0 %v951, 16
        %v1033 = vpop.permute.xlu0 %1032
        %1034 = vrot.lane.b32.xlu0 %v953, 16
        %v1035 = vpop.permute.xlu0 %1034
        %1036 = vrot.lane.b32.xlu0 %v955, 16
        %v1037 = vpop.permute.xlu0 %1036
        %1038 = vrot.lane.b32.xlu0 %v957, 16
        %v1039 = vpop.permute.xlu0 %1038
        %1040 = vrot.lane.b32.xlu0 %v959, 16
        %v1041 = vpop.permute.xlu0 %1040
        %1042 = vrot.lane.b32.xlu0 %v961, 16
        %v1043 = vpop.permute.xlu0 %1042
        %1044 = vrot.lane.b32.xlu0 %v963, 16
        %v1045 = vpop.permute.xlu0 %1044
        %1046 = vrot.lane.b32.xlu0 %v965, 16
        %v1047 = vpop.permute.xlu0 %1046
        %vm1089 = vcmask 1043456
        %v1090 = vrot.slane %v253, 4
        %v1091 = vrot.slane %v254, 4
        %v1092 = vsel %vm1089, %v1090, %v1091
        %v1093 = vrot.slane %v255, 4
        %v1094 = vsel %vm1089, %v1091, %v1093
        %v1095 = vrot.slane %v256, 4
        %v1096 = vsel %vm1089, %v1093, %v1095
        %v1097 = vrot.slane %v257, 4
        %v1098 = vsel %vm1089, %v1095, %v1097
        %v1099 = vrot.slane %v258, 4
        %v1100 = vsel %vm1089, %v1097, %v1099
        %v1101 = vrot.slane %v259, 4
        %v1102 = vsel %vm1089, %v1099, %v1101
        %v1103 = vrot.slane %v260, 4
        %v1104 = vsel %vm1089, %v1101, %v1103
        %v1105 = vrot.slane %v261, 4
        %v1106 = vsel %vm1089, %v1103, %v1105
        %v1107 = vrot.slane %v262, 4
        %v1108 = vsel %vm1089, %v1105, %v1107
        %v1109 = vrot.slane %v263, 4
        %v1110 = vsel %vm1089, %v1107, %v1109
        %v1111 = vrot.slane %v264, 4
        %v1112 = vsel %vm1089, %v1109, %v1111
        %v1113 = vrot.slane %v265, 4
        %v1114 = vsel %vm1089, %v1111, %v1113
        %v1115 = vrot.slane %v266, 4
        %v1116 = vsel %vm1089, %v1113, %v1115
        %v1117 = vrot.slane %v267, 4
        %v1118 = vsel %vm1089, %v1115, %v1117
        %v1119 = vrot.slane %v268, 4
        %v1120 = vsel %vm1089, %v1117, %v1119
        %v1121 = vrot.slane %v269, 4
        %v1122 = vsel %vm1089, %v1119, %v1121
        %v1123 = vrot.slane %v270, 4
        %v1124 = vsel %vm1089, %v1121, %v1123
        %v1125 = vrot.slane %v271, 4
        %v1126 = vsel %vm1089, %v1123, %v1125
        %v1127 = vrot.slane %v272, 4
        %v1128 = vsel %vm1089, %v1125, %v1127
        %v1129 = vrot.slane %v273, 4
        %v1130 = vsel %vm1089, %v1127, %v1129
        %v1131 = vrot.slane %v274, 4
        %v1132 = vsel %vm1089, %v1129, %v1131
        %v1133 = vrot.slane %v275, 4
        %v1134 = vsel %vm1089, %v1131, %v1133
        %v1135 = vrot.slane %v276, 4
        %v1136 = vsel %vm1089, %v1133, %v1135
        %v1137 = vrot.slane %v277, 4
        %v1138 = vsel %vm1089, %v1135, %v1137
        %v1139 = vrot.slane %v278, 4
        %v1140 = vsel %vm1089, %v1137, %v1139
        %v1141 = vrot.slane %v279, 4
        %v1142 = vsel %vm1089, %v1139, %v1141
        %v1143 = vrot.slane %v280, 4
        %v1144 = vsel %vm1089, %v1141, %v1143
        %v1145 = vrot.slane %v281, 4
        %v1146 = vsel %vm1089, %v1143, %v1145
        %v1147 = vrot.slane %v282, 4
        %v1148 = vsel %vm1089, %v1145, %v1147
        %v1149 = vrot.slane %v283, 4
        %v1150 = vsel %vm1089, %v1147, %v1149
        %v1151 = vrot.slane %v284, 4
        %v1152 = vsel %vm1089, %v1149, %v1151
        %v1153 = vrot.slane %v285, 4
        %v1154 = vsel %vm1089, %v1151, %v1153
        %v1155 = vrot.slane %v286, 4
        %v1156 = vsel %vm1089, %v1153, %v1155
        %v1157 = vrot.slane %v287, 4
        %v1158 = vsel %vm1089, %v1155, %v1157
        %v1159 = vrot.slane %v288, 4
        %v1160 = vsel %vm1089, %v1157, %v1159
        %v1161 = vrot.slane %v289, 4
        %v1162 = vsel %vm1089, %v1159, %v1161
        %v1163 = vrot.slane %v290, 4
        %v1164 = vsel %vm1089, %v1161, %v1163
        %v1165 = vrot.slane %v291, 4
        %v1166 = vsel %vm1089, %v1163, %v1165
        %v1167 = vrot.slane %v292, 4
        %v1168 = vsel %vm1089, %v1165, %v1167
        %v1169 = vrot.slane %v293, 4
        %v1170 = vsel %vm1089, %v1167, %v1169
        %v1171 = vrot.slane %v294, 4
        %v1172 = vsel %vm1089, %v1169, %v1171
        %1173 = vrot.lane.b32.xlu0 %v1092, 20
        %v1174 = vpop.permute.xlu0 %1173
        %1175 = vrot.lane.b32.xlu0 %v1094, 20
        %v1176 = vpop.permute.xlu0 %1175
        %1177 = vrot.lane.b32.xlu0 %v1096, 20
        %v1178 = vpop.permute.xlu0 %1177
        %1179 = vrot.lane.b32.xlu0 %v1098, 20
        %v1180 = vpop.permute.xlu0 %1179
        %1181 = vrot.lane.b32.xlu0 %v1100, 20
        %v1182 = vpop.permute.xlu0 %1181
        %1183 = vrot.lane.b32.xlu0 %v1102, 20
        %v1184 = vpop.permute.xlu0 %1183
        %1185 = vrot.lane.b32.xlu0 %v1104, 20
        %v1186 = vpop.permute.xlu0 %1185
        %1187 = vrot.lane.b32.xlu0 %v1106, 20
        %v1188 = vpop.permute.xlu0 %1187
        %1189 = vrot.lane.b32.xlu0 %v1108, 20
        %v1190 = vpop.permute.xlu0 %1189
        %1191 = vrot.lane.b32.xlu0 %v1110, 20
        %v1192 = vpop.permute.xlu0 %1191
        %1193 = vrot.lane.b32.xlu0 %v1112, 20
        %v1194 = vpop.permute.xlu0 %1193
        %1195 = vrot.lane.b32.xlu0 %v1114, 20
        %v1196 = vpop.permute.xlu0 %1195
        %1197 = vrot.lane.b32.xlu0 %v1116, 20
        %v1198 = vpop.permute.xlu0 %1197
        %1199 = vrot.lane.b32.xlu0 %v1118, 20
        %v1200 = vpop.permute.xlu0 %1199
        %1201 = vrot.lane.b32.xlu0 %v1120, 20
        %v1202 = vpop.permute.xlu0 %1201
        %1203 = vrot.lane.b32.xlu0 %v1122, 20
        %v1204 = vpop.permute.xlu0 %1203
        %1205 = vrot.lane.b32.xlu0 %v1124, 20
        %v1206 = vpop.permute.xlu0 %1205
        %1207 = vrot.lane.b32.xlu0 %v1126, 20
        %v1208 = vpop.permute.xlu0 %1207
        %1209 = vrot.lane.b32.xlu0 %v1128, 20
        %v1210 = vpop.permute.xlu0 %1209
        %1211 = vrot.lane.b32.xlu0 %v1130, 20
        %v1212 = vpop.permute.xlu0 %1211
        %1213 = vrot.lane.b32.xlu0 %v1132, 20
        %v1214 = vpop.permute.xlu0 %1213
        %1215 = vrot.lane.b32.xlu0 %v1134, 20
        %v1216 = vpop.permute.xlu0 %1215
        %1217 = vrot.lane.b32.xlu0 %v1136, 20
        %v1218 = vpop.permute.xlu0 %1217
        %1219 = vrot.lane.b32.xlu0 %v1138, 20
        %v1220 = vpop.permute.xlu0 %1219
        %1221 = vrot.lane.b32.xlu0 %v1140, 20
        %v1222 = vpop.permute.xlu0 %1221
        %1223 = vrot.lane.b32.xlu0 %v1142, 20
        %v1224 = vpop.permute.xlu0 %1223
        %1225 = vrot.lane.b32.xlu0 %v1144, 20
        %v1226 = vpop.permute.xlu0 %1225
        %1227 = vrot.lane.b32.xlu0 %v1146, 20
        %v1228 = vpop.permute.xlu0 %1227
        %1229 = vrot.lane.b32.xlu0 %v1148, 20
        %v1230 = vpop.permute.xlu0 %1229
        %1231 = vrot.lane.b32.xlu0 %v1150, 20
        %v1232 = vpop.permute.xlu0 %1231
        %1233 = vrot.lane.b32.xlu0 %v1152, 20
        %v1234 = vpop.permute.xlu0 %1233
        %1235 = vrot.lane.b32.xlu0 %v1154, 20
        %v1236 = vpop.permute.xlu0 %1235
        %1237 = vrot.lane.b32.xlu0 %v1156, 20
        %v1238 = vpop.permute.xlu0 %1237
        %1239 = vrot.lane.b32.xlu0 %v1158, 20
        %v1240 = vpop.permute.xlu0 %1239
        %1241 = vrot.lane.b32.xlu0 %v1160, 20
        %v1242 = vpop.permute.xlu0 %1241
        %1243 = vrot.lane.b32.xlu0 %v1162, 20
        %v1244 = vpop.permute.xlu0 %1243
        %1245 = vrot.lane.b32.xlu0 %v1164, 20
        %v1246 = vpop.permute.xlu0 %1245
        %1247 = vrot.lane.b32.xlu0 %v1166, 20
        %v1248 = vpop.permute.xlu0 %1247
        %1249 = vrot.lane.b32.xlu0 %v1168, 20
        %v1250 = vpop.permute.xlu0 %1249
        %1251 = vrot.lane.b32.xlu0 %v1170, 20
        %v1252 = vpop.permute.xlu0 %1251
        %1253 = vrot.lane.b32.xlu0 %v1172, 20
        %v1254 = vpop.permute.xlu0 %1253
        %v1298 = vrot.slane %v295, 4
        %v1299 = vsel %vm1089, %v1171, %v1298
        %v1300 = vrot.slane %v296, 4
        %v1301 = vsel %vm1089, %v1298, %v1300
        %1302 = vrot.lane.b32.xlu0 %v1096, 24
        %v1303 = vpop.permute.xlu0 %1302
        %1304 = vrot.lane.b32.xlu0 %v1098, 24
        %v1305 = vpop.permute.xlu0 %1304
        %1306 = vrot.lane.b32.xlu0 %v1100, 24
        %v1307 = vpop.permute.xlu0 %1306
        %1308 = vrot.lane.b32.xlu0 %v1102, 24
        %v1309 = vpop.permute.xlu0 %1308
        %1310 = vrot.lane.b32.xlu0 %v1104, 24
        %v1311 = vpop.permute.xlu0 %1310
        %1312 = vrot.lane.b32.xlu0 %v1106, 24
        %v1313 = vpop.permute.xlu0 %1312
        %1314 = vrot.lane.b32.xlu0 %v1108, 24
        %v1315 = vpop.permute.xlu0 %1314
        %1316 = vrot.lane.b32.xlu0 %v1110, 24
        %v1317 = vpop.permute.xlu0 %1316
        %1318 = vrot.lane.b32.xlu0 %v1112, 24
        %v1319 = vpop.permute.xlu0 %1318
        %1320 = vrot.lane.b32.xlu0 %v1114, 24
        %v1321 = vpop.permute.xlu0 %1320
        %1322 = vrot.lane.b32.xlu0 %v1116, 24
        %v1323 = vpop.permute.xlu0 %1322
        %1324 = vrot.lane.b32.xlu0 %v1118, 24
        %v1325 = vpop.permute.xlu0 %1324
        %1326 = vrot.lane.b32.xlu0 %v1120, 24
        %v1327 = vpop.permute.xlu0 %1326
        %1328 = vrot.lane.b32.xlu0 %v1122, 24
        %v1329 = vpop.permute.xlu0 %1328
        %1330 = vrot.lane.b32.xlu0 %v1124, 24
        %v1331 = vpop.permute.xlu0 %1330
        %1332 = vrot.lane.b32.xlu0 %v1126, 24
        %v1333 = vpop.permute.xlu0 %1332
        %1334 = vrot.lane.b32.xlu0 %v1128, 24
        %v1335 = vpop.permute.xlu0 %1334
        %1336 = vrot.lane.b32.xlu0 %v1130, 24
        %v1337 = vpop.permute.xlu0 %1336
        %1338 = vrot.lane.b32.xlu0 %v1132, 24
        %v1339 = vpop.permute.xlu0 %1338
        %1340 = vrot.lane.b32.xlu0 %v1134, 24
        %v1341 = vpop.permute.xlu0 %1340
        %1342 = vrot.lane.b32.xlu0 %v1136, 24
        %v1343 = vpop.permute.xlu0 %1342
        %1344 = vrot.lane.b32.xlu0 %v1138, 24
        %v1345 = vpop.permute.xlu0 %1344
        %1346 = vrot.lane.b32.xlu0 %v1140, 24
        %v1347 = vpop.permute.xlu0 %1346
        %1348 = vrot.lane.b32.xlu0 %v1142, 24
        %v1349 = vpop.permute.xlu0 %1348
        %1350 = vrot.lane.b32.xlu0 %v1144, 24
        %v1351 = vpop.permute.xlu0 %1350
        %1352 = vrot.lane.b32.xlu0 %v1146, 24
        %v1353 = vpop.permute.xlu0 %1352
        %1354 = vrot.lane.b32.xlu0 %v1148, 24
        %v1355 = vpop.permute.xlu0 %1354
        %1356 = vrot.lane.b32.xlu0 %v1150, 24
        %v1357 = vpop.permute.xlu0 %1356
        %1358 = vrot.lane.b32.xlu0 %v1152, 24
        %v1359 = vpop.permute.xlu0 %1358
        %1360 = vrot.lane.b32.xlu0 %v1154, 24
        %v1361 = vpop.permute.xlu0 %1360
        %1362 = vrot.lane.b32.xlu0 %v1156, 24
        %v1363 = vpop.permute.xlu0 %1362
        %1364 = vrot.lane.b32.xlu0 %v1158, 24
        %v1365 = vpop.permute.xlu0 %1364
        %1366 = vrot.lane.b32.xlu0 %v1160, 24
        %v1367 = vpop.permute.xlu0 %1366
        %1368 = vrot.lane.b32.xlu0 %v1162, 24
        %v1369 = vpop.permute.xlu0 %1368
        %1370 = vrot.lane.b32.xlu0 %v1164, 24
        %v1371 = vpop.permute.xlu0 %1370
        %1372 = vrot.lane.b32.xlu0 %v1166, 24
        %v1373 = vpop.permute.xlu0 %1372
        %1374 = vrot.lane.b32.xlu0 %v1168, 24
        %v1375 = vpop.permute.xlu0 %1374
        %1376 = vrot.lane.b32.xlu0 %v1170, 24
        %v1377 = vpop.permute.xlu0 %1376
        %1378 = vrot.lane.b32.xlu0 %v1172, 24
        %v1379 = vpop.permute.xlu0 %1378
        %1380 = vrot.lane.b32.xlu0 %v1299, 24
        %v1381 = vpop.permute.xlu0 %1380
        %1382 = vrot.lane.b32.xlu0 %v1301, 24
        %v1383 = vpop.permute.xlu0 %1382
        %vm1425 = vcmask 1042432
        %v1426 = vrot.slane %v255, 5
        %v1427 = vrot.slane %v256, 5
        %v1428 = vsel %vm1425, %v1426, %v1427
        %v1429 = vrot.slane %v257, 5
        %v1430 = vsel %vm1425, %v1427, %v1429
        %v1431 = vrot.slane %v258, 5
        %v1432 = vsel %vm1425, %v1429, %v1431
        %v1433 = vrot.slane %v259, 5
        %v1434 = vsel %vm1425, %v1431, %v1433
        %v1435 = vrot.slane %v260, 5
        %v1436 = vsel %vm1425, %v1433, %v1435
        %v1437 = vrot.slane %v261, 5
        %v1438 = vsel %vm1425, %v1435, %v1437
        %v1439 = vrot.slane %v262, 5
        %v1440 = vsel %vm1425, %v1437, %v1439
        %v1441 = vrot.slane %v263, 5
        %v1442 = vsel %vm1425, %v1439, %v1441
        %v1443 = vrot.slane %v264, 5
        %v1444 = vsel %vm1425, %v1441, %v1443
        %v1445 = vrot.slane %v265, 5
        %v1446 = vsel %vm1425, %v1443, %v1445
        %v1447 = vrot.slane %v266, 5
        %v1448 = vsel %vm1425, %v1445, %v1447
        %v1449 = vrot.slane %v267, 5
        %v1450 = vsel %vm1425, %v1447, %v1449
        %v1451 = vrot.slane %v268, 5
        %v1452 = vsel %vm1425, %v1449, %v1451
        %v1453 = vrot.slane %v269, 5
        %v1454 = vsel %vm1425, %v1451, %v1453
        %v1455 = vrot.slane %v270, 5
        %v1456 = vsel %vm1425, %v1453, %v1455
        %v1457 = vrot.slane %v271, 5
        %v1458 = vsel %vm1425, %v1455, %v1457
        %v1459 = vrot.slane %v272, 5
        %v1460 = vsel %vm1425, %v1457, %v1459
        %v1461 = vrot.slane %v273, 5
        %v1462 = vsel %vm1425, %v1459, %v1461
        %v1463 = vrot.slane %v274, 5
        %v1464 = vsel %vm1425, %v1461, %v1463
        %v1465 = vrot.slane %v275, 5
        %v1466 = vsel %vm1425, %v1463, %v1465
        %v1467 = vrot.slane %v276, 5
        %v1468 = vsel %vm1425, %v1465, %v1467
        %v1469 = vrot.slane %v277, 5
        %v1470 = vsel %vm1425, %v1467, %v1469
        %v1471 = vrot.slane %v278, 5
        %v1472 = vsel %vm1425, %v1469, %v1471
        %v1473 = vrot.slane %v279, 5
        %v1474 = vsel %vm1425, %v1471, %v1473
        %v1475 = vrot.slane %v280, 5
        %v1476 = vsel %vm1425, %v1473, %v1475
        %v1477 = vrot.slane %v281, 5
        %v1478 = vsel %vm1425, %v1475, %v1477
        %v1479 = vrot.slane %v282, 5
        %v1480 = vsel %vm1425, %v1477, %v1479
        %v1481 = vrot.slane %v283, 5
        %v1482 = vsel %vm1425, %v1479, %v1481
        %v1483 = vrot.slane %v284, 5
        %v1484 = vsel %vm1425, %v1481, %v1483
        %v1485 = vrot.slane %v285, 5
        %v1486 = vsel %vm1425, %v1483, %v1485
        %v1487 = vrot.slane %v286, 5
        %v1488 = vsel %vm1425, %v1485, %v1487
        %v1489 = vrot.slane %v287, 5
        %v1490 = vsel %vm1425, %v1487, %v1489
        %v1491 = vrot.slane %v288, 5
        %v1492 = vsel %vm1425, %v1489, %v1491
        %v1493 = vrot.slane %v289, 5
        %v1494 = vsel %vm1425, %v1491, %v1493
        %v1495 = vrot.slane %v290, 5
        %v1496 = vsel %vm1425, %v1493, %v1495
        %v1497 = vrot.slane %v291, 5
        %v1498 = vsel %vm1425, %v1495, %v1497
        %v1499 = vrot.slane %v292, 5
        %v1500 = vsel %vm1425, %v1497, %v1499
        %v1501 = vrot.slane %v293, 5
        %v1502 = vsel %vm1425, %v1499, %v1501
        %v1503 = vrot.slane %v294, 5
        %v1504 = vsel %vm1425, %v1501, %v1503
        %v1505 = vrot.slane %v295, 5
        %v1506 = vsel %vm1425, %v1503, %v1505
        %v1507 = vrot.slane %v296, 5
        %v1508 = vsel %vm1425, %v1505, %v1507
        %1509 = vrot.lane.b32.xlu0 %v1428, 28
        %v1510 = vpop.permute.xlu0 %1509
        %1511 = vrot.lane.b32.xlu0 %v1430, 28
        %v1512 = vpop.permute.xlu0 %1511
        %1513 = vrot.lane.b32.xlu0 %v1432, 28
        %v1514 = vpop.permute.xlu0 %1513
        %1515 = vrot.lane.b32.xlu0 %v1434, 28
        %v1516 = vpop.permute.xlu0 %1515
        %1517 = vrot.lane.b32.xlu0 %v1436, 28
        %v1518 = vpop.permute.xlu0 %1517
        %1519 = vrot.lane.b32.xlu0 %v1438, 28
        %v1520 = vpop.permute.xlu0 %1519
        %1521 = vrot.lane.b32.xlu0 %v1440, 28
        %v1522 = vpop.permute.xlu0 %1521
        %1523 = vrot.lane.b32.xlu0 %v1442, 28
        %v1524 = vpop.permute.xlu0 %1523
        %1525 = vrot.lane.b32.xlu0 %v1444, 28
        %v1526 = vpop.permute.xlu0 %1525
        %1527 = vrot.lane.b32.xlu0 %v1446, 28
        %v1528 = vpop.permute.xlu0 %1527
        %1529 = vrot.lane.b32.xlu0 %v1448, 28
        %v1530 = vpop.permute.xlu0 %1529
        %1531 = vrot.lane.b32.xlu0 %v1450, 28
        %v1532 = vpop.permute.xlu0 %1531
        %1533 = vrot.lane.b32.xlu0 %v1452, 28
        %v1534 = vpop.permute.xlu0 %1533
        %1535 = vrot.lane.b32.xlu0 %v1454, 28
        %v1536 = vpop.permute.xlu0 %1535
        %1537 = vrot.lane.b32.xlu0 %v1456, 28
        %v1538 = vpop.permute.xlu0 %1537
        %1539 = vrot.lane.b32.xlu0 %v1458, 28
        %v1540 = vpop.permute.xlu0 %1539
        %1541 = vrot.lane.b32.xlu0 %v1460, 28
        %v1542 = vpop.permute.xlu0 %1541
        %1543 = vrot.lane.b32.xlu0 %v1462, 28
        %v1544 = vpop.permute.xlu0 %1543
        %1545 = vrot.lane.b32.xlu0 %v1464, 28
        %v1546 = vpop.permute.xlu0 %1545
        %1547 = vrot.lane.b32.xlu0 %v1466, 28
        %v1548 = vpop.permute.xlu0 %1547
        %1549 = vrot.lane.b32.xlu0 %v1468, 28
        %v1550 = vpop.permute.xlu0 %1549
        %1551 = vrot.lane.b32.xlu0 %v1470, 28
        %v1552 = vpop.permute.xlu0 %1551
        %1553 = vrot.lane.b32.xlu0 %v1472, 28
        %v1554 = vpop.permute.xlu0 %1553
        %1555 = vrot.lane.b32.xlu0 %v1474, 28
        %v1556 = vpop.permute.xlu0 %1555
        %1557 = vrot.lane.b32.xlu0 %v1476, 28
        %v1558 = vpop.permute.xlu0 %1557
        %1559 = vrot.lane.b32.xlu0 %v1478, 28
        %v1560 = vpop.permute.xlu0 %1559
        %1561 = vrot.lane.b32.xlu0 %v1480, 28
        %v1562 = vpop.permute.xlu0 %1561
        %1563 = vrot.lane.b32.xlu0 %v1482, 28
        %v1564 = vpop.permute.xlu0 %1563
        %1565 = vrot.lane.b32.xlu0 %v1484, 28
        %v1566 = vpop.permute.xlu0 %1565
        %1567 = vrot.lane.b32.xlu0 %v1486, 28
        %v1568 = vpop.permute.xlu0 %1567
        %1569 = vrot.lane.b32.xlu0 %v1488, 28
        %v1570 = vpop.permute.xlu0 %1569
        %1571 = vrot.lane.b32.xlu0 %v1490, 28
        %v1572 = vpop.permute.xlu0 %1571
        %1573 = vrot.lane.b32.xlu0 %v1492, 28
        %v1574 = vpop.permute.xlu0 %1573
        %1575 = vrot.lane.b32.xlu0 %v1494, 28
        %v1576 = vpop.permute.xlu0 %1575
        %1577 = vrot.lane.b32.xlu0 %v1496, 28
        %v1578 = vpop.permute.xlu0 %1577
        %1579 = vrot.lane.b32.xlu0 %v1498, 28
        %v1580 = vpop.permute.xlu0 %1579
        %1581 = vrot.lane.b32.xlu0 %v1500, 28
        %v1582 = vpop.permute.xlu0 %1581
        %1583 = vrot.lane.b32.xlu0 %v1502, 28
        %v1584 = vpop.permute.xlu0 %1583
        %1585 = vrot.lane.b32.xlu0 %v1504, 28
        %v1586 = vpop.permute.xlu0 %1585
        %1587 = vrot.lane.b32.xlu0 %v1506, 28
        %v1588 = vpop.permute.xlu0 %1587
        %1589 = vrot.lane.b32.xlu0 %v1508, 28
        %v1590 = vpop.permute.xlu0 %1589
        %vm1632 = vcmask 1041408
        %v1633 = vrot.slane %v255, 6
        %v1634 = vrot.slane %v256, 6
        %v1635 = vsel %vm1632, %v1633, %v1634
        %v1636 = vrot.slane %v257, 6
        %v1637 = vsel %vm1632, %v1634, %v1636
        %v1638 = vrot.slane %v258, 6
        %v1639 = vsel %vm1632, %v1636, %v1638
        %v1640 = vrot.slane %v259, 6
        %v1641 = vsel %vm1632, %v1638, %v1640
        %v1642 = vrot.slane %v260, 6
        %v1643 = vsel %vm1632, %v1640, %v1642
        %v1644 = vrot.slane %v261, 6
        %v1645 = vsel %vm1632, %v1642, %v1644
        %v1646 = vrot.slane %v262, 6
        %v1647 = vsel %vm1632, %v1644, %v1646
        %v1648 = vrot.slane %v263, 6
        %v1649 = vsel %vm1632, %v1646, %v1648
        %v1650 = vrot.slane %v264, 6
        %v1651 = vsel %vm1632, %v1648, %v1650
        %v1652 = vrot.slane %v265, 6
        %v1653 = vsel %vm1632, %v1650, %v1652
        %v1654 = vrot.slane %v266, 6
        %v1655 = vsel %vm1632, %v1652, %v1654
        %v1656 = vrot.slane %v267, 6
        %v1657 = vsel %vm1632, %v1654, %v1656
        %v1658 = vrot.slane %v268, 6
        %v1659 = vsel %vm1632, %v1656, %v1658
        %v1660 = vrot.slane %v269, 6
        %v1661 = vsel %vm1632, %v1658, %v1660
        %v1662 = vrot.slane %v270, 6
        %v1663 = vsel %vm1632, %v1660, %v1662
        %v1664 = vrot.slane %v271, 6
        %v1665 = vsel %vm1632, %v1662, %v1664
        %v1666 = vrot.slane %v272, 6
        %v1667 = vsel %vm1632, %v1664, %v1666
        %v1668 = vrot.slane %v273, 6
        %v1669 = vsel %vm1632, %v1666, %v1668
        %v1670 = vrot.slane %v274, 6
        %v1671 = vsel %vm1632, %v1668, %v1670
        %v1672 = vrot.slane %v275, 6
        %v1673 = vsel %vm1632, %v1670, %v1672
        %v1674 = vrot.slane %v276, 6
        %v1675 = vsel %vm1632, %v1672, %v1674
        %v1676 = vrot.slane %v277, 6
        %v1677 = vsel %vm1632, %v1674, %v1676
        %v1678 = vrot.slane %v278, 6
        %v1679 = vsel %vm1632, %v1676, %v1678
        %v1680 = vrot.slane %v279, 6
        %v1681 = vsel %vm1632, %v1678, %v1680
        %v1682 = vrot.slane %v280, 6
        %v1683 = vsel %vm1632, %v1680, %v1682
        %v1684 = vrot.slane %v281, 6
        %v1685 = vsel %vm1632, %v1682, %v1684
        %v1686 = vrot.slane %v282, 6
        %v1687 = vsel %vm1632, %v1684, %v1686
        %v1688 = vrot.slane %v283, 6
        %v1689 = vsel %vm1632, %v1686, %v1688
        %v1690 = vrot.slane %v284, 6
        %v1691 = vsel %vm1632, %v1688, %v1690
        %v1692 = vrot.slane %v285, 6
        %v1693 = vsel %vm1632, %v1690, %v1692
        %v1694 = vrot.slane %v286, 6
        %v1695 = vsel %vm1632, %v1692, %v1694
        %v1696 = vrot.slane %v287, 6
        %v1697 = vsel %vm1632, %v1694, %v1696
        %v1698 = vrot.slane %v288, 6
        %v1699 = vsel %vm1632, %v1696, %v1698
        %v1700 = vrot.slane %v289, 6
        %v1701 = vsel %vm1632, %v1698, %v1700
        %v1702 = vrot.slane %v290, 6
        %v1703 = vsel %vm1632, %v1700, %v1702
        %v1704 = vrot.slane %v291, 6
        %v1705 = vsel %vm1632, %v1702, %v1704
        %v1706 = vrot.slane %v292, 6
        %v1707 = vsel %vm1632, %v1704, %v1706
        %v1708 = vrot.slane %v293, 6
        %v1709 = vsel %vm1632, %v1706, %v1708
        %v1710 = vrot.slane %v294, 6
        %v1711 = vsel %vm1632, %v1708, %v1710
        %v1712 = vrot.slane %v295, 6
        %v1713 = vsel %vm1632, %v1710, %v1712
        %v1714 = vrot.slane %v296, 6
        %v1715 = vsel %vm1632, %v1712, %v1714
        %1716 = vrot.lane.b32.xlu0 %v1635, 32
        %v1717 = vpop.permute.xlu0 %1716
        %1718 = vrot.lane.b32.xlu0 %v1637, 32
        %v1719 = vpop.permute.xlu0 %1718
        %1720 = vrot.lane.b32.xlu0 %v1639, 32
        %v1721 = vpop.permute.xlu0 %1720
        %1722 = vrot.lane.b32.xlu0 %v1641, 32
        %v1723 = vpop.permute.xlu0 %1722
        %1724 = vrot.lane.b32.xlu0 %v1643, 32
        %v1725 = vpop.permute.xlu0 %1724
        %1726 = vrot.lane.b32.xlu0 %v1645, 32
        %v1727 = vpop.permute.xlu0 %1726
        %1728 = vrot.lane.b32.xlu0 %v1647, 32
        %v1729 = vpop.permute.xlu0 %1728
        %1730 = vrot.lane.b32.xlu0 %v1649, 32
        %v1731 = vpop.permute.xlu0 %1730
        %1732 = vrot.lane.b32.xlu0 %v1651, 32
        %v1733 = vpop.permute.xlu0 %1732
        %1734 = vrot.lane.b32.xlu0 %v1653, 32
        %v1735 = vpop.permute.xlu0 %1734
        %1736 = vrot.lane.b32.xlu0 %v1655, 32
        %v1737 = vpop.permute.xlu0 %1736
        %1738 = vrot.lane.b32.xlu0 %v1657, 32
        %v1739 = vpop.permute.xlu0 %1738
        %1740 = vrot.lane.b32.xlu0 %v1659, 32
        %v1741 = vpop.permute.xlu0 %1740
        %1742 = vrot.lane.b32.xlu0 %v1661, 32
        %v1743 = vpop.permute.xlu0 %1742
        %1744 = vrot.lane.b32.xlu0 %v1663, 32
        %v1745 = vpop.permute.xlu0 %1744
        %1746 = vrot.lane.b32.xlu0 %v1665, 32
        %v1747 = vpop.permute.xlu0 %1746
        %1748 = vrot.lane.b32.xlu0 %v1667, 32
        %v1749 = vpop.permute.xlu0 %1748
        %1750 = vrot.lane.b32.xlu0 %v1669, 32
        %v1751 = vpop.permute.xlu0 %1750
        %1752 = vrot.lane.b32.xlu0 %v1671, 32
        %v1753 = vpop.permute.xlu0 %1752
        %1754 = vrot.lane.b32.xlu0 %v1673, 32
        %v1755 = vpop.permute.xlu0 %1754
        %1756 = vrot.lane.b32.xlu0 %v1675, 32
        %v1757 = vpop.permute.xlu0 %1756
        %1758 = vrot.lane.b32.xlu0 %v1677, 32
        %v1759 = vpop.permute.xlu0 %1758
        %1760 = vrot.lane.b32.xlu0 %v1679, 32
        %v1761 = vpop.permute.xlu0 %1760
        %1762 = vrot.lane.b32.xlu0 %v1681, 32
        %v1763 = vpop.permute.xlu0 %1762
        %1764 = vrot.lane.b32.xlu0 %v1683, 32
        %v1765 = vpop.permute.xlu0 %1764
        %1766 = vrot.lane.b32.xlu0 %v1685, 32
        %v1767 = vpop.permute.xlu0 %1766
        %1768 = vrot.lane.b32.xlu0 %v1687, 32
        %v1769 = vpop.permute.xlu0 %1768
        %1770 = vrot.lane.b32.xlu0 %v1689, 32
        %v1771 = vpop.permute.xlu0 %1770
        %1772 = vrot.lane.b32.xlu0 %v1691, 32
        %v1773 = vpop.permute.xlu0 %1772
        %1774 = vrot.lane.b32.xlu0 %v1693, 32
        %v1775 = vpop.permute.xlu0 %1774
        %1776 = vrot.lane.b32.xlu0 %v1695, 32
        %v1777 = vpop.permute.xlu0 %1776
        %1778 = vrot.lane.b32.xlu0 %v1697, 32
        %v1779 = vpop.permute.xlu0 %1778
        %1780 = vrot.lane.b32.xlu0 %v1699, 32
        %v1781 = vpop.permute.xlu0 %1780
        %1782 = vrot.lane.b32.xlu0 %v1701, 32
        %v1783 = vpop.permute.xlu0 %1782
        %1784 = vrot.lane.b32.xlu0 %v1703, 32
        %v1785 = vpop.permute.xlu0 %1784
        %1786 = vrot.lane.b32.xlu0 %v1705, 32
        %v1787 = vpop.permute.xlu0 %1786
        %1788 = vrot.lane.b32.xlu0 %v1707, 32
        %v1789 = vpop.permute.xlu0 %1788
        %1790 = vrot.lane.b32.xlu0 %v1709, 32
        %v1791 = vpop.permute.xlu0 %1790
        %1792 = vrot.lane.b32.xlu0 %v1711, 32
        %v1793 = vpop.permute.xlu0 %1792
        %1794 = vrot.lane.b32.xlu0 %v1713, 32
        %v1795 = vpop.permute.xlu0 %1794
        %1796 = vrot.lane.b32.xlu0 %v1715, 32
        %v1797 = vpop.permute.xlu0 %1796
        %vm1839 = vcmask 31744
        %v1840 = vsel %vm1839, %v251, %v424
        %v1841 = vsel %vm1839, %v252, %v426
        %v1842 = vsel %vm1839, %v253, %v428
        %v1843 = vsel %vm1839, %v254, %v430
        %v1844 = vsel %vm1839, %v255, %v432
        %v1845 = vsel %vm1839, %v256, %v434
        %v1846 = vsel %vm1839, %v257, %v436
        %v1847 = vsel %vm1839, %v258, %v438
        %v1848 = vsel %vm1839, %v259, %v440
        %v1849 = vsel %vm1839, %v260, %v442
        %v1850 = vsel %vm1839, %v261, %v444
        %v1851 = vsel %vm1839, %v262, %v446
        %v1852 = vsel %vm1839, %v263, %v448
        %v1853 = vsel %vm1839, %v264, %v450
        %v1854 = vsel %vm1839, %v265, %v452
        %v1855 = vsel %vm1839, %v266, %v454
        %v1856 = vsel %vm1839, %v267, %v456
        %v1857 = vsel %vm1839, %v268, %v458
        %v1858 = vsel %vm1839, %v269, %v460
        %v1859 = vsel %vm1839, %v270, %v462
        %v1860 = vsel %vm1839, %v271, %v464
        %v1861 = vsel %vm1839, %v272, %v466
        %v1862 = vsel %vm1839, %v273, %v468
        %v1863 = vsel %vm1839, %v274, %v470
        %v1864 = vsel %vm1839, %v275, %v472
        %v1865 = vsel %vm1839, %v276, %v474
        %v1866 = vsel %vm1839, %v277, %v476
        %v1867 = vsel %vm1839, %v278, %v478
        %v1868 = vsel %vm1839, %v279, %v480
        %v1869 = vsel %vm1839, %v280, %v482
        %v1870 = vsel %vm1839, %v281, %v484
        %v1871 = vsel %vm1839, %v282, %v486
        %v1872 = vsel %vm1839, %v283, %v488
        %v1873 = vsel %vm1839, %v284, %v490
        %v1874 = vsel %vm1839, %v285, %v492
        %v1875 = vsel %vm1839, %v286, %v494
        %v1876 = vsel %vm1839, %v287, %v496
        %v1877 = vsel %vm1839, %v288, %v498
        %v1878 = vsel %vm1839, %v289, %v500
        %v1879 = vsel %vm1839, %v290, %v502
        %v1880 = vsel %vm1839, %v291, %v504
        %vm1881 = vcmask 64512
        %v1882 = vsel %vm1881, %v1840, %v631
        %v1883 = vsel %vm1881, %v1841, %v633
        %v1884 = vsel %vm1881, %v1842, %v635
        %v1885 = vsel %vm1881, %v1843, %v637
        %v1886 = vsel %vm1881, %v1844, %v639
        %v1887 = vsel %vm1881, %v1845, %v641
        %v1888 = vsel %vm1881, %v1846, %v643
        %v1889 = vsel %vm1881, %v1847, %v645
        %v1890 = vsel %vm1881, %v1848, %v647
        %v1891 = vsel %vm1881, %v1849, %v649
        %v1892 = vsel %vm1881, %v1850, %v651
        %v1893 = vsel %vm1881, %v1851, %v653
        %v1894 = vsel %vm1881, %v1852, %v655
        %v1895 = vsel %vm1881, %v1853, %v657
        %v1896 = vsel %vm1881, %v1854, %v659
        %v1897 = vsel %vm1881, %v1855, %v661
        %v1898 = vsel %vm1881, %v1856, %v663
        %v1899 = vsel %vm1881, %v1857, %v665
        %v1900 = vsel %vm1881, %v1858, %v667
        %v1901 = vsel %vm1881, %v1859, %v669
        %v1902 = vsel %vm1881, %v1860, %v671
        %v1903 = vsel %vm1881, %v1861, %v673
        %v1904 = vsel %vm1881, %v1862, %v675
        %v1905 = vsel %vm1881, %v1863, %v677
        %v1906 = vsel %vm1881, %v1864, %v679
        %v1907 = vsel %vm1881, %v1865, %v681
        %v1908 = vsel %vm1881, %v1866, %v683
        %v1909 = vsel %vm1881, %v1867, %v685
        %v1910 = vsel %vm1881, %v1868, %v687
        %v1911 = vsel %vm1881, %v1869, %v689
        %v1912 = vsel %vm1881, %v1870, %v691
        %v1913 = vsel %vm1881, %v1871, %v693
        %v1914 = vsel %vm1881, %v1872, %v695
        %v1915 = vsel %vm1881, %v1873, %v697
        %v1916 = vsel %vm1881, %v1874, %v699
        %v1917 = vsel %vm1881, %v1875, %v701
        %v1918 = vsel %vm1881, %v1876, %v703
        %v1919 = vsel %vm1881, %v1877, %v705
        %v1920 = vsel %vm1881, %v1878, %v707
        %v1921 = vsel %vm1881, %v1879, %v709
        %v1922 = vsel %vm1881, %v1880, %v711
        %vm1923 = vcmask 97280
        %v1924 = vsel %vm1923, %v1882, %v760
        %v1925 = vsel %vm1923, %v1883, %v762
        %v1926 = vsel %vm1923, %v1884, %v764
        %v1927 = vsel %vm1923, %v1885, %v766
        %v1928 = vsel %vm1923, %v1886, %v768
        %v1929 = vsel %vm1923, %v1887, %v770
        %v1930 = vsel %vm1923, %v1888, %v772
        %v1931 = vsel %vm1923, %v1889, %v774
        %v1932 = vsel %vm1923, %v1890, %v776
        %v1933 = vsel %vm1923, %v1891, %v778
        %v1934 = vsel %vm1923, %v1892, %v780
        %v1935 = vsel %vm1923, %v1893, %v782
        %v1936 = vsel %vm1923, %v1894, %v784
        %v1937 = vsel %vm1923, %v1895, %v786
        %v1938 = vsel %vm1923, %v1896, %v788
        %v1939 = vsel %vm1923, %v1897, %v790
        %v1940 = vsel %vm1923, %v1898, %v792
        %v1941 = vsel %vm1923, %v1899, %v794
        %v1942 = vsel %vm1923, %v1900, %v796
        %v1943 = vsel %vm1923, %v1901, %v798
        %v1944 = vsel %vm1923, %v1902, %v800
        %v1945 = vsel %vm1923, %v1903, %v802
        %v1946 = vsel %vm1923, %v1904, %v804
        %v1947 = vsel %vm1923, %v1905, %v806
        %v1948 = vsel %vm1923, %v1906, %v808
        %v1949 = vsel %vm1923, %v1907, %v810
        %v1950 = vsel %vm1923, %v1908, %v812
        %v1951 = vsel %vm1923, %v1909, %v814
        %v1952 = vsel %vm1923, %v1910, %v816
        %v1953 = vsel %vm1923, %v1911, %v818
        %v1954 = vsel %vm1923, %v1912, %v820
        %v1955 = vsel %vm1923, %v1913, %v822
        %v1956 = vsel %vm1923, %v1914, %v824
        %v1957 = vsel %vm1923, %v1915, %v826
        %v1958 = vsel %vm1923, %v1916, %v828
        %v1959 = vsel %vm1923, %v1917, %v830
        %v1960 = vsel %vm1923, %v1918, %v832
        %v1961 = vsel %vm1923, %v1919, %v834
        %v1962 = vsel %vm1923, %v1920, %v836
        %v1963 = vsel %vm1923, %v1921, %v838
        %v1964 = vsel %vm1923, %v1922, %v840
        %vm1965 = vcmask 130048
        %v1966 = vsel %vm1965, %v1924, %v967
        %v1967 = vsel %vm1965, %v1925, %v969
        %v1968 = vsel %vm1965, %v1926, %v971
        %v1969 = vsel %vm1965, %v1927, %v973
        %v1970 = vsel %vm1965, %v1928, %v975
        %v1971 = vsel %vm1965, %v1929, %v977
        %v1972 = vsel %vm1965, %v1930, %v979
        %v1973 = vsel %vm1965, %v1931, %v981
        %v1974 = vsel %vm1965, %v1932, %v983
        %v1975 = vsel %vm1965, %v1933, %v985
        %v1976 = vsel %vm1965, %v1934, %v987
        %v1977 = vsel %vm1965, %v1935, %v989
        %v1978 = vsel %vm1965, %v1936, %v991
        %v1979 = vsel %vm1965, %v1937, %v993
        %v1980 = vsel %vm1965, %v1938, %v995
        %v1981 = vsel %vm1965, %v1939, %v997
        %v1982 = vsel %vm1965, %v1940, %v999
        %v1983 = vsel %vm1965, %v1941, %v1001
        %v1984 = vsel %vm1965, %v1942, %v1003
        %v1985 = vsel %vm1965, %v1943, %v1005
        %v1986 = vsel %vm1965, %v1944, %v1007
        %v1987 = vsel %vm1965, %v1945, %v1009
        %v1988 = vsel %vm1965, %v1946, %v1011
        %v1989 = vsel %vm1965, %v1947, %v1013
        %v1990 = vsel %vm1965, %v1948, %v1015
        %v1991 = vsel %vm1965, %v1949, %v1017
        %v1992 = vsel %vm1965, %v1950, %v1019
        %v1993 = vsel %vm1965, %v1951, %v1021
        %v1994 = vsel %vm1965, %v1952, %v1023
        %v1995 = vsel %vm1965, %v1953, %v1025
        %v1996 = vsel %vm1965, %v1954, %v1027
        %v1997 = vsel %vm1965, %v1955, %v1029
        %v1998 = vsel %vm1965, %v1956, %v1031
        %v1999 = vsel %vm1965, %v1957, %v1033
        %v2000 = vsel %vm1965, %v1958, %v1035
        %v2001 = vsel %vm1965, %v1959, %v1037
        %v2002 = vsel %vm1965, %v1960, %v1039
        %v2003 = vsel %vm1965, %v1961, %v1041
        %v2004 = vsel %vm1965, %v1962, %v1043
        %v2005 = vsel %vm1965, %v1963, %v1045
        %v2006 = vsel %vm1965, %v1964, %v1047
        %vm2007 = vcmask 162816
        %v2008 = vsel %vm2007, %v1966, %v1174
        %v2009 = vsel %vm2007, %v1967, %v1176
        %v2010 = vsel %vm2007, %v1968, %v1178
        %v2011 = vsel %vm2007, %v1969, %v1180
        %v2012 = vsel %vm2007, %v1970, %v1182
        %v2013 = vsel %vm2007, %v1971, %v1184
        %v2014 = vsel %vm2007, %v1972, %v1186
        %v2015 = vsel %vm2007, %v1973, %v1188
        %v2016 = vsel %vm2007, %v1974, %v1190
        %v2017 = vsel %vm2007, %v1975, %v1192
        %v2018 = vsel %vm2007, %v1976, %v1194
        %v2019 = vsel %vm2007, %v1977, %v1196
        %v2020 = vsel %vm2007, %v1978, %v1198
        %v2021 = vsel %vm2007, %v1979, %v1200
        %v2022 = vsel %vm2007, %v1980, %v1202
        %v2023 = vsel %vm2007, %v1981, %v1204
        %v2024 = vsel %vm2007, %v1982, %v1206
        %v2025 = vsel %vm2007, %v1983, %v1208
        %v2026 = vsel %vm2007, %v1984, %v1210
        %v2027 = vsel %vm2007, %v1985, %v1212
        %v2028 = vsel %vm2007, %v1986, %v1214
        %v2029 = vsel %vm2007, %v1987, %v1216
        %v2030 = vsel %vm2007, %v1988, %v1218
        %v2031 = vsel %vm2007, %v1989, %v1220
        %v2032 = vsel %vm2007, %v1990, %v1222
        %v2033 = vsel %vm2007, %v1991, %v1224
        %v2034 = vsel %vm2007, %v1992, %v1226
        %v2035 = vsel %vm2007, %v1993, %v1228
        %v2036 = vsel %vm2007, %v1994, %v1230
        %v2037 = vsel %vm2007, %v1995, %v1232
        %v2038 = vsel %vm2007, %v1996, %v1234
        %v2039 = vsel %vm2007, %v1997, %v1236
        %v2040 = vsel %vm2007, %v1998, %v1238
        %v2041 = vsel %vm2007, %v1999, %v1240
        %v2042 = vsel %vm2007, %v2000, %v1242
        %v2043 = vsel %vm2007, %v2001, %v1244
        %v2044 = vsel %vm2007, %v2002, %v1246
        %v2045 = vsel %vm2007, %v2003, %v1248
        %v2046 = vsel %vm2007, %v2004, %v1250
        %v2047 = vsel %vm2007, %v2005, %v1252
        %v2048 = vsel %vm2007, %v2006, %v1254
        %vm2049 = vcmask 195584
        %v2050 = vsel %vm2049, %v2008, %v1303
        %v2051 = vsel %vm2049, %v2009, %v1305
        %v2052 = vsel %vm2049, %v2010, %v1307
        %v2053 = vsel %vm2049, %v2011, %v1309
        %v2054 = vsel %vm2049, %v2012, %v1311
        %v2055 = vsel %vm2049, %v2013, %v1313
        %v2056 = vsel %vm2049, %v2014, %v1315
        %v2057 = vsel %vm2049, %v2015, %v1317
        %v2058 = vsel %vm2049, %v2016, %v1319
        %v2059 = vsel %vm2049, %v2017, %v1321
        %v2060 = vsel %vm2049, %v2018, %v1323
        %v2061 = vsel %vm2049, %v2019, %v1325
        %v2062 = vsel %vm2049, %v2020, %v1327
        %v2063 = vsel %vm2049, %v2021, %v1329
        %v2064 = vsel %vm2049, %v2022, %v1331
        %v2065 = vsel %vm2049, %v2023, %v1333
        %v2066 = vsel %vm2049, %v2024, %v1335
        %v2067 = vsel %vm2049, %v2025, %v1337
        %v2068 = vsel %vm2049, %v2026, %v1339
        %v2069 = vsel %vm2049, %v2027, %v1341
        %v2070 = vsel %vm2049, %v2028, %v1343
        %v2071 = vsel %vm2049, %v2029, %v1345
        %v2072 = vsel %vm2049, %v2030, %v1347
        %v2073 = vsel %vm2049, %v2031, %v1349
        %v2074 = vsel %vm2049, %v2032, %v1351
        %v2075 = vsel %vm2049, %v2033, %v1353
        %v2076 = vsel %vm2049, %v2034, %v1355
        %v2077 = vsel %vm2049, %v2035, %v1357
        %v2078 = vsel %vm2049, %v2036, %v1359
        %v2079 = vsel %vm2049, %v2037, %v1361
        %v2080 = vsel %vm2049, %v2038, %v1363
        %v2081 = vsel %vm2049, %v2039, %v1365
        %v2082 = vsel %vm2049, %v2040, %v1367
        %v2083 = vsel %vm2049, %v2041, %v1369
        %v2084 = vsel %vm2049, %v2042, %v1371
        %v2085 = vsel %vm2049, %v2043, %v1373
        %v2086 = vsel %vm2049, %v2044, %v1375
        %v2087 = vsel %vm2049, %v2045, %v1377
        %v2088 = vsel %vm2049, %v2046, %v1379
        %v2089 = vsel %vm2049, %v2047, %v1381
        %v2090 = vsel %vm2049, %v2048, %v1383
        %vm2091 = vcmask 228352
        %v2092 = vsel %vm2091, %v2050, %v1510
        %v2093 = vsel %vm2091, %v2051, %v1512
        %v2094 = vsel %vm2091, %v2052, %v1514
        %v2095 = vsel %vm2091, %v2053, %v1516
        %v2096 = vsel %vm2091, %v2054, %v1518
        %v2097 = vsel %vm2091, %v2055, %v1520
        %v2098 = vsel %vm2091, %v2056, %v1522
        %v2099 = vsel %vm2091, %v2057, %v1524
        %v2100 = vsel %vm2091, %v2058, %v1526
        %v2101 = vsel %vm2091, %v2059, %v1528
        %v2102 = vsel %vm2091, %v2060, %v1530
        %v2103 = vsel %vm2091, %v2061, %v1532
        %v2104 = vsel %vm2091, %v2062, %v1534
        %v2105 = vsel %vm2091, %v2063, %v1536
        %v2106 = vsel %vm2091, %v2064, %v1538
        %v2107 = vsel %vm2091, %v2065, %v1540
        %v2108 = vsel %vm2091, %v2066, %v1542
        %v2109 = vsel %vm2091, %v2067, %v1544
        %v2110 = vsel %vm2091, %v2068, %v1546
        %v2111 = vsel %vm2091, %v2069, %v1548
        %v2112 = vsel %vm2091, %v2070, %v1550
        %v2113 = vsel %vm2091, %v2071, %v1552
        %v2114 = vsel %vm2091, %v2072, %v1554
        %v2115 = vsel %vm2091, %v2073, %v1556
        %v2116 = vsel %vm2091, %v2074, %v1558
        %v2117 = vsel %vm2091, %v2075, %v1560
        %v2118 = vsel %vm2091, %v2076, %v1562
        %v2119 = vsel %vm2091, %v2077, %v1564
        %v2120 = vsel %vm2091, %v2078, %v1566
        %v2121 = vsel %vm2091, %v2079, %v1568
        %v2122 = vsel %vm2091, %v2080, %v1570
        %v2123 = vsel %vm2091, %v2081, %v1572
        %v2124 = vsel %vm2091, %v2082, %v1574
        %v2125 = vsel %vm2091, %v2083, %v1576
        %v2126 = vsel %vm2091, %v2084, %v1578
        %v2127 = vsel %vm2091, %v2085, %v1580
        %v2128 = vsel %vm2091, %v2086, %v1582
        %v2129 = vsel %vm2091, %v2087, %v1584
        %v2130 = vsel %vm2091, %v2088, %v1586
        %v2131 = vsel %vm2091, %v2089, %v1588
        %v2132 = vsel %vm2091, %v2090, %v1590
        %vm2133 = vcmask 261120
        %v2134 = vsel %vm2133, %v2092, %v1717
        %v2135 = vsel %vm2133, %v2093, %v1719
        %v2136 = vsel %vm2133, %v2094, %v1721
        %v2137 = vsel %vm2133, %v2095, %v1723
        %v2138 = vsel %vm2133, %v2096, %v1725
        %v2139 = vsel %vm2133, %v2097, %v1727
        %v2140 = vsel %vm2133, %v2098, %v1729
        %v2141 = vsel %vm2133, %v2099, %v1731
        %v2142 = vsel %vm2133, %v2100, %v1733
        %v2143 = vsel %vm2133, %v2101, %v1735
        %v2144 = vsel %vm2133, %v2102, %v1737
        %v2145 = vsel %vm2133, %v2103, %v1739
        %v2146 = vsel %vm2133, %v2104, %v1741
        %v2147 = vsel %vm2133, %v2105, %v1743
        %v2148 = vsel %vm2133, %v2106, %v1745
        %v2149 = vsel %vm2133, %v2107, %v1747
        %v2150 = vsel %vm2133, %v2108, %v1749
        %v2151 = vsel %vm2133, %v2109, %v1751
        %v2152 = vsel %vm2133, %v2110, %v1753
        %v2153 = vsel %vm2133, %v2111, %v1755
        %v2154 = vsel %vm2133, %v2112, %v1757
        %v2155 = vsel %vm2133, %v2113, %v1759
        %v2156 = vsel %vm2133, %v2114, %v1761
        %v2157 = vsel %vm2133, %v2115, %v1763
        %v2158 = vsel %vm2133, %v2116, %v1765
        %v2159 = vsel %vm2133, %v2117, %v1767
        %v2160 = vsel %vm2133, %v2118, %v1769
        %v2161 = vsel %vm2133, %v2119, %v1771
        %v2162 = vsel %vm2133, %v2120, %v1773
        %v2163 = vsel %vm2133, %v2121, %v1775
        %v2164 = vsel %vm2133, %v2122, %v1777
        %v2165 = vsel %vm2133, %v2123, %v1779
        %v2166 = vsel %vm2133, %v2124, %v1781
        %v2167 = vsel %vm2133, %v2125, %v1783
        %v2168 = vsel %vm2133, %v2126, %v1785
        %v2169 = vsel %vm2133, %v2127, %v1787
        %v2170 = vsel %vm2133, %v2128, %v1789
        %v2171 = vsel %vm2133, %v2129, %v1791
        %v2172 = vsel %vm2133, %v2130, %v1793
        %v2173 = vsel %vm2133, %v2131, %v1795
        %v2174 = vsel %vm2133, %v2132, %v1797
        %v2175 = vpack.c.bf16 %v2135, %v2134
        %v2176 = vpack.c.bf16 %v2137, %v2136
        %v2177 = vpack.c.bf16 %v2139, %v2138
        %v2178 = vpack.c.bf16 %v2141, %v2140
        %v2179 = vpack.c.bf16 %v2143, %v2142
        %v2180 = vpack.c.bf16 %v2145, %v2144
        %v2181 = vpack.c.bf16 %v2147, %v2146
        %v2182 = vpack.c.bf16 %v2149, %v2148
        %v2183 = vpack.c.bf16 %v2151, %v2150
        %v2184 = vpack.c.bf16 %v2153, %v2152
        %v2185 = vpack.c.bf16 %v2155, %v2154
        %v2186 = vpack.c.bf16 %v2157, %v2156
        %v2187 = vpack.c.bf16 %v2159, %v2158
        %v2188 = vpack.c.bf16 %v2161, %v2160
        %v2189 = vpack.c.bf16 %v2163, %v2162
        %v2190 = vpack.c.bf16 %v2165, %v2164
        %v2191 = vpack.c.bf16 %v2167, %v2166
        %v2192 = vpack.c.bf16 %v2169, %v2168
        %v2193 = vpack.c.bf16 %v2171, %v2170
        %v2194 = vpack.c.bf16 %v2173, %v2172
        %v2195 = vpack.c.bf16 %v2174, %v2174
        %v2196 = vld [vmem:[%s1] sm:$0xf]
        %v2197 = vld [vmem:[%s1 + $0x4] sm:$0xf]
        %v2198 = vld [vmem:[%s1 + $0x8] sm:$0xf]
        %v2199 = vld [vmem:[%s1 + $0xc] sm:$0xf]
        %v2200 = vld [vmem:[%s1 + $0x10] sm:$0x3]
        %v2201 = vld [vmem:[%s2] sm:$0x1]
        %v2203 = vlaneseq
        %v2204 = vshrl.u32 %v2203, 7
        %v2205 = vsub.s32 0, %v2204
        %v2206 = vrot.slane %v2201, %v2205
        %v2213 = vunpack.c.l.b16 %v2196
        %v2214 = vunpack.c.l.b16 %v2197
        %v2215 = vunpack.c.l.b16 %v2198
        %v2216 = vunpack.c.l.b16 %v2199
        %v2217 = vunpack.c.l.b16 %v2200
        %v2218 = vpack.c.b16 %v2214, %v2213
        %v2219 = vpack.c.b16 %v2216, %v2215
        %v2220 = vpack.c.b16 %v2217, %v2217
        %vm2223 = vcmask 293888
        %v2225 = vsel %vm2223, %v2175, 0
        %v2228 = vsel %vm2223, %v2176, 0
        %v2231 = vsel %vm2223, %v2177, 0
        %v2234 = vsel %vm2223, %v2178, 0
        %v2237 = vsel %vm2223, %v2179, 0
        %v2240 = vsel %vm2223, %v2180, 0
        %v2243 = vsel %vm2223, %v2181, 0
        %v2246 = vsel %vm2223, %v2182, 0
        %v2249 = vsel %vm2223, %v2183, 0
        %v2252 = vsel %vm2223, %v2184, 0
        %v2255 = vsel %vm2223, %v2185, 0
        %v2258 = vsel %vm2223, %v2186, 0
        %v2261 = vsel %vm2223, %v2187, 0
        %v2264 = vsel %vm2223, %v2188, 0
        %v2267 = vsel %vm2223, %v2189, 0
        %v2270 = vsel %vm2223, %v2190, 0
        %v2273 = vsel %vm2223, %v2191, 0
        %v2276 = vsel %vm2223, %v2192, 0
        %v2279 = vsel %vm2223, %v2193, 0
        %v2282 = vsel %vm2223, %v2194, 0
        %v2285 = vsel %vm2223, %v2195, 0
        %v2288 = vsel %vm1632, %v2220, 0
        %2290 = vmatprep.subr.bf16.mxu0 0
        %2291 = vmatpush1.bf16.msra.mxu0 0
        %2292 = vmatprep.subr.bf16.mxu0 0
        %2293 = vmatpush1.bf16.msra.mxu0 0
        %2294 = vmatprep.subr.bf16.mxu0 0
        %2295 = vmatpush1.bf16.msra.mxu0 0
        %2296 = vmatprep.subr.bf16.mxu0 0
        %2297 = vmatpush1.bf16.msra.mxu0 0
        %2298 = vmatprep.subr.bf16.mxu0 0
        %2299 = vmatpush1.bf16.msra.mxu0 0
        %2300 = vmatprep.subr.bf16.mxu0 0
        %2301 = vmatpush1.bf16.msra.mxu0 %v2288
        %2302 = vmatprep.subr.bf16.mxu0 0
        %2303 = vmatpush1.bf16.msra.mxu0 %v2219
        %2304 = vmatprep.subr.bf16.mxu0 0
        %2305 = vmatpush1.bf16.msra.mxu0 %v2218
        %2306 = vmatprep.subr.bf16.mxu0 0
        %2307 = vmatpush2.bf16.msra.mxu0 0
        %2308 = vmatprep.subr.bf16.mxu0 0
        %2309 = vmatpush2.bf16.msra.mxu0 0
        %2310 = vmatprep.subr.bf16.mxu0 0
        %2311 = vmatpush2.bf16.msra.mxu0 0
        %2312 = vmatprep.subr.bf16.mxu0 0
        %2313 = vmatpush2.bf16.msra.mxu0 0
        %2314 = vmatprep.subr.bf16.mxu0 0
        %2315 = vmatpush2.bf16.msra.mxu0 0
        %2316 = vmatprep.subr.bf16.mxu0 0
        %2317 = vmatpush2.bf16.msra.mxu0 0
        %2318 = vmatprep.subr.bf16.mxu0 0
        %2319 = vmatpush2.bf16.msra.mxu0 0
        %2320 = vmatprep.subr.bf16.mxu0 0
        %2321 = vmatpush2.bf16.msra.mxu0 0
        %2322 = vmatprep.mubr.bf16.mxu0 0
        %2323 = vmatmul.mubr.bf16.gmra.mxu0 %v2225
        %v2324 = vpop.f32.mrf.mxu0
        %v2325 = vadd.f32 %v2206, %v2324
        %v2326 = vpop.f32.mrf.mxu0
        %v2327 = vpop.f32.mrf.mxu0
        %v2328 = vadd.f32 %v2206, %v2327
        %v2329 = vpop.f32.mrf.mxu0
        %2330 = vmatprep.mubr.bf16.mxu0 0
        %2331 = vmatmul.mubr.bf16.gmra.mxu0 %v2228
        %v2332 = vpop.f32.mrf.mxu0
        %v2333 = vadd.f32 %v2206, %v2332
        %v2334 = vpop.f32.mrf.mxu0
        %v2335 = vpop.f32.mrf.mxu0
        %v2336 = vadd.f32 %v2206, %v2335
        %v2337 = vpop.f32.mrf.mxu0
        %2338 = vmatprep.mubr.bf16.mxu0 0
        %2339 = vmatmul.mubr.bf16.gmra.mxu0 %v2231
        %v2340 = vpop.f32.mrf.mxu0
        %v2341 = vadd.f32 %v2206, %v2340
        %v2342 = vpop.f32.mrf.mxu0
        %v2343 = vpop.f32.mrf.mxu0
        %v2344 = vadd.f32 %v2206, %v2343
        %v2345 = vpop.f32.mrf.mxu0
        %2346 = vmatprep.mubr.bf16.mxu0 0
        %2347 = vmatmul.mubr.bf16.gmra.mxu0 %v2234
        %v2348 = vpop.f32.mrf.mxu0
        %v2349 = vadd.f32 %v2206, %v2348
        %v2350 = vpop.f32.mrf.mxu0
        %v2351 = vpop.f32.mrf.mxu0
        %v2352 = vadd.f32 %v2206, %v2351
        %v2353 = vpop.f32.mrf.mxu0
        %2354 = vmatprep.mubr.bf16.mxu0 0
        %2355 = vmatmul.mubr.bf16.gmra.mxu0 %v2237
        %v2356 = vpop.f32.mrf.mxu0
        %v2357 = vadd.f32 %v2206, %v2356
        %v2358 = vpop.f32.mrf.mxu0
        %v2359 = vpop.f32.mrf.mxu0
        %v2360 = vadd.f32 %v2206, %v2359
        %v2361 = vpop.f32.mrf.mxu0
        %2362 = vmatprep.mubr.bf16.mxu0 0
        %2363 = vmatmul.mubr.bf16.gmra.mxu0 %v2240
        %v2364 = vpop.f32.mrf.mxu0
        %v2365 = vadd.f32 %v2206, %v2364
        %v2366 = vpop.f32.mrf.mxu0
        %v2367 = vpop.f32.mrf.mxu0
        %v2368 = vadd.f32 %v2206, %v2367
        %v2369 = vpop.f32.mrf.mxu0
        %2370 = vmatprep.mubr.bf16.mxu0 0
        %2371 = vmatmul.mubr.bf16.gmra.mxu0 %v2243
        %v2372 = vpop.f32.mrf.mxu0
        %v2373 = vadd.f32 %v2206, %v2372
        %v2374 = vpop.f32.mrf.mxu0
        %v2375 = vpop.f32.mrf.mxu0
        %v2376 = vadd.f32 %v2206, %v2375
        %v2377 = vpop.f32.mrf.mxu0
        %2378 = vmatprep.mubr.bf16.mxu0 0
        %2379 = vmatmul.mubr.bf16.gmra.mxu0 %v2246
        %v2380 = vpop.f32.mrf.mxu0
        %v2381 = vadd.f32 %v2206, %v2380
        %v2382 = vpop.f32.mrf.mxu0
        %v2383 = vpop.f32.mrf.mxu0
        %v2384 = vadd.f32 %v2206, %v2383
        %v2385 = vpop.f32.mrf.mxu0
        %2386 = vmatprep.mubr.bf16.mxu0 0
        %2387 = vmatmul.mubr.bf16.gmra.mxu0 %v2249
        %v2388 = vpop.f32.mrf.mxu0
        %v2389 = vadd.f32 %v2206, %v2388
        %v2390 = vpop.f32.mrf.mxu0
        %v2391 = vpop.f32.mrf.mxu0
        %v2392 = vadd.f32 %v2206, %v2391
        %v2393 = vpop.f32.mrf.mxu0
        %2394 = vmatprep.mubr.bf16.mxu0 0
        %2395 = vmatmul.mubr.bf16.gmra.mxu0 %v2252
        %v2396 = vpop.f32.mrf.mxu0
        %v2397 = vadd.f32 %v2206, %v2396
        %v2398 = vpop.f32.mrf.mxu0
        %v2399 = vpop.f32.mrf.mxu0
        %v2400 = vadd.f32 %v2206, %v2399
        %v2401 = vpop.f32.mrf.mxu0
        %2402 = vmatprep.mubr.bf16.mxu0 0
        %2403 = vmatmul.mubr.bf16.gmra.mxu0 %v2255
        %v2404 = vpop.f32.mrf.mxu0
        %v2405 = vadd.f32 %v2206, %v2404
        %v2406 = vpop.f32.mrf.mxu0
        %v2407 = vpop.f32.mrf.mxu0
        %v2408 = vadd.f32 %v2206, %v2407
        %v2409 = vpop.f32.mrf.mxu0
        %2410 = vmatprep.mubr.bf16.mxu0 0
        %2411 = vmatmul.mubr.bf16.gmra.mxu0 %v2258
        %v2412 = vpop.f32.mrf.mxu0
        %v2413 = vadd.f32 %v2206, %v2412
        %v2414 = vpop.f32.mrf.mxu0
        %v2415 = vpop.f32.mrf.mxu0
        %v2416 = vadd.f32 %v2206, %v2415
        %v2417 = vpop.f32.mrf.mxu0
        %2418 = vmatprep.mubr.bf16.mxu0 0
        %2419 = vmatmul.mubr.bf16.gmra.mxu0 %v2261
        %v2420 = vpop.f32.mrf.mxu0
        %v2421 = vadd.f32 %v2206, %v2420
        %v2422 = vpop.f32.mrf.mxu0
        %v2423 = vpop.f32.mrf.mxu0
        %v2424 = vadd.f32 %v2206, %v2423
        %v2425 = vpop.f32.mrf.mxu0
        %2426 = vmatprep.mubr.bf16.mxu0 0
        %2427 = vmatmul.mubr.bf16.gmra.mxu0 %v2264
        %v2428 = vpop.f32.mrf.mxu0
        %v2429 = vadd.f32 %v2206, %v2428
        %v2430 = vpop.f32.mrf.mxu0
        %v2431 = vpop.f32.mrf.mxu0
        %v2432 = vadd.f32 %v2206, %v2431
        %v2433 = vpop.f32.mrf.mxu0
        %2434 = vmatprep.mubr.bf16.mxu0 0
        %2435 = vmatmul.mubr.bf16.gmra.mxu0 %v2267
        %v2436 = vpop.f32.mrf.mxu0
        %v2437 = vadd.f32 %v2206, %v2436
        %v2438 = vpop.f32.mrf.mxu0
        %v2439 = vpop.f32.mrf.mxu0
        %v2440 = vadd.f32 %v2206, %v2439
        %v2441 = vpop.f32.mrf.mxu0
        %2442 = vmatprep.mubr.bf16.mxu0 0
        %2443 = vmatmul.mubr.bf16.gmra.mxu0 %v2270
        %v2444 = vpop.f32.mrf.mxu0
        %v2445 = vadd.f32 %v2206, %v2444
        %v2446 = vpop.f32.mrf.mxu0
        %v2447 = vpop.f32.mrf.mxu0
        %v2448 = vadd.f32 %v2206, %v2447
        %v2449 = vpop.f32.mrf.mxu0
        %2450 = vmatprep.mubr.bf16.mxu0 0
        %2451 = vmatmul.mubr.bf16.gmra.mxu0 %v2273
        %v2452 = vpop.f32.mrf.mxu0
        %v2453 = vadd.f32 %v2206, %v2452
        %v2454 = vpop.f32.mrf.mxu0
        %v2455 = vpop.f32.mrf.mxu0
        %v2456 = vadd.f32 %v2206, %v2455
        %v2457 = vpop.f32.mrf.mxu0
        %2458 = vmatprep.mubr.bf16.mxu0 0
        %2459 = vmatmul.mubr.bf16.gmra.mxu0 %v2276
        %v2460 = vpop.f32.mrf.mxu0
        %v2461 = vadd.f32 %v2206, %v2460
        %v2462 = vpop.f32.mrf.mxu0
        %v2463 = vpop.f32.mrf.mxu0
        %v2464 = vadd.f32 %v2206, %v2463
        %v2465 = vpop.f32.mrf.mxu0
        %2466 = vmatprep.mubr.bf16.mxu0 0
        %2467 = vmatmul.mubr.bf16.gmra.mxu0 %v2279
        %v2468 = vpop.f32.mrf.mxu0
        %v2469 = vadd.f32 %v2206, %v2468
        %v2470 = vpop.f32.mrf.mxu0
        %v2471 = vpop.f32.mrf.mxu0
        %v2472 = vadd.f32 %v2206, %v2471
        %v2473 = vpop.f32.mrf.mxu0
        %2474 = vmatprep.mubr.bf16.mxu0 0
        %2475 = vmatmul.mubr.bf16.gmra.mxu0 %v2282
        %v2476 = vpop.f32.mrf.mxu0
        %v2477 = vadd.f32 %v2206, %v2476
        %v2478 = vpop.f32.mrf.mxu0
        %v2479 = vpop.f32.mrf.mxu0
        %v2480 = vadd.f32 %v2206, %v2479
        %v2481 = vpop.f32.mrf.mxu0
        %2482 = vmatprep.mubr.bf16.mxu0 0
        %2483 = vmatmul.mubr.bf16.gmra.mxu0 %v2285
        %v2484 = vpop.f32.mrf.mxu0
        %v2485 = vadd.f32 %v2206, %v2484
        %v2486 = vpop.f32.mrf.mxu0
        %v2487 = vpop.f32.mrf.mxu0
        %v2488 = vpop.f32.mrf.mxu0
        %2489 = vdwg.mxu0
        %v2490 = vmax.f32 %v2325, 0.0
        %v2491 = vmax.f32 %v2328, 0.0
        %v2492 = vmax.f32 %v2333, 0.0
        %v2493 = vmax.f32 %v2336, 0.0
        %v2494 = vmax.f32 %v2341, 0.0
        %v2495 = vmax.f32 %v2344, 0.0
        %v2496 = vmax.f32 %v2349, 0.0
        %v2497 = vmax.f32 %v2352, 0.0
        %v2498 = vmax.f32 %v2357, 0.0
        %v2499 = vmax.f32 %v2360, 0.0
        %v2500 = vmax.f32 %v2365, 0.0
        %v2501 = vmax.f32 %v2368, 0.0
        %v2502 = vmax.f32 %v2373, 0.0
        %v2503 = vmax.f32 %v2376, 0.0
        %v2504 = vmax.f32 %v2381, 0.0
        %v2505 = vmax.f32 %v2384, 0.0
        %v2506 = vmax.f32 %v2389, 0.0
        %v2507 = vmax.f32 %v2392, 0.0
        %v2508 = vmax.f32 %v2397, 0.0
        %v2509 = vmax.f32 %v2400, 0.0
        %v2510 = vmax.f32 %v2405, 0.0
        %v2511 = vmax.f32 %v2408, 0.0
        %v2512 = vmax.f32 %v2413, 0.0
        %v2513 = vmax.f32 %v2416, 0.0
        %v2514 = vmax.f32 %v2421, 0.0
        %v2515 = vmax.f32 %v2424, 0.0
        %v2516 = vmax.f32 %v2429, 0.0
        %v2517 = vmax.f32 %v2432, 0.0
        %v2518 = vmax.f32 %v2437, 0.0
        %v2519 = vmax.f32 %v2440, 0.0
        %v2520 = vmax.f32 %v2445, 0.0
        %v2521 = vmax.f32 %v2448, 0.0
        %v2522 = vmax.f32 %v2453, 0.0
        %v2523 = vmax.f32 %v2456, 0.0
        %v2524 = vmax.f32 %v2461, 0.0
        %v2525 = vmax.f32 %v2464, 0.0
        %v2526 = vmax.f32 %v2469, 0.0
        %v2527 = vmax.f32 %v2472, 0.0
        %v2528 = vmax.f32 %v2477, 0.0
        %v2529 = vmax.f32 %v2480, 0.0
        %v2530 = vmax.f32 %v2485, 0.0
        %v2531 = vld [vmem:[%s3] sm:$0xff]
        %v2532 = vld [vmem:[%s3 + $0x8] sm:$0xf]
        %v2533 = vld [vmem:[%s3 + $0xc] sm:$0xff]
        %v2534 = vld [vmem:[%s3 + $0x14] sm:$0xf]
        %v2535 = vpack.c.bf16 %v2491, %v2490
        %v2536 = vpack.c.bf16 %v2493, %v2492
        %v2537 = vpack.c.bf16 %v2495, %v2494
        %v2538 = vpack.c.bf16 %v2497, %v2496
        %v2539 = vpack.c.bf16 %v2499, %v2498
        %v2540 = vpack.c.bf16 %v2501, %v2500
        %v2541 = vpack.c.bf16 %v2503, %v2502
        %v2542 = vpack.c.bf16 %v2505, %v2504
        %v2543 = vpack.c.bf16 %v2507, %v2506
        %v2544 = vpack.c.bf16 %v2509, %v2508
        %v2545 = vpack.c.bf16 %v2511, %v2510
        %v2546 = vpack.c.bf16 %v2513, %v2512
        %v2547 = vpack.c.bf16 %v2515, %v2514
        %v2548 = vpack.c.bf16 %v2517, %v2516
        %v2549 = vpack.c.bf16 %v2519, %v2518
        %v2550 = vpack.c.bf16 %v2521, %v2520
        %v2551 = vpack.c.bf16 %v2523, %v2522
        %v2552 = vpack.c.bf16 %v2525, %v2524
        %v2553 = vpack.c.bf16 %v2527, %v2526
        %v2554 = vpack.c.bf16 %v2529, %v2528
        %v2555 = vpack.c.bf16 %v2530, %v2530
        %v2560 = vunpack.c.l.b16 %v2531
        %v2561 = vunpack.c.h.b16 %v2531
        %v2562 = vunpack.c.l.b16 %v2532
        %v2563 = vunpack.c.l.b16 %v2533
        %v2564 = vunpack.c.h.b16 %v2533
        %v2565 = vunpack.c.l.b16 %v2534
        %v2566 = vpack.c.b16 %v2563, %v2560
        %v2567 = vpack.c.b16 %v2564, %v2561
        %v2568 = vpack.c.b16 %v2565, %v2562
        %vm2571 = vcmask 588800
        %v2573 = vsel %vm2571, %v2568, 0
        %v2576 = vsel %vm1089, %v2555, 0
        %2578 = vmatprep.subr.bf16.mxu0 0
        %2579 = vmatpush1.bf16.msra.mxu0 %v2542
        %2580 = vmatprep.subr.bf16.mxu0 0
        %2581 = vmatpush1.bf16.msra.mxu0 %v2541
        %2582 = vmatprep.subr.bf16.mxu0 0
        %2583 = vmatpush1.bf16.msra.mxu0 %v2540
        %2584 = vmatprep.subr.bf16.mxu0 0
        %2585 = vmatpush1.bf16.msra.mxu0 %v2539
        %2586 = vmatprep.subr.bf16.mxu0 0
        %2587 = vmatpush1.bf16.msra.mxu0 %v2538
        %2588 = vmatprep.subr.bf16.mxu0 0
        %2589 = vmatpush1.bf16.msra.mxu0 %v2537
        %2590 = vmatprep.subr.bf16.mxu0 0
        %2591 = vmatpush1.bf16.msra.mxu0 %v2536
        %2592 = vmatprep.subr.bf16.mxu0 0
        %2593 = vmatpush1.bf16.msra.mxu0 %v2535
        %2594 = vmatprep.subr.bf16.mxu0 0
        %2595 = vmatpush2.bf16.msra.mxu0 %v2550
        %2596 = vmatprep.subr.bf16.mxu0 0
        %2597 = vmatpush2.bf16.msra.mxu0 %v2549
        %2598 = vmatprep.subr.bf16.mxu0 0
        %2599 = vmatpush2.bf16.msra.mxu0 %v2548
        %2600 = vmatprep.subr.bf16.mxu0 0
        %2601 = vmatpush2.bf16.msra.mxu0 %v2547
        %2602 = vmatprep.subr.bf16.mxu0 0
        %2603 = vmatpush2.bf16.msra.mxu0 %v2546
        %2604 = vmatprep.subr.bf16.mxu0 0
        %2605 = vmatpush2.bf16.msra.mxu0 %v2545
        %2606 = vmatprep.subr.bf16.mxu0 0
        %2607 = vmatpush2.bf16.msra.mxu0 %v2544
        %2608 = vmatprep.subr.bf16.mxu0 0
        %2609 = vmatpush2.bf16.msra.mxu0 %v2543
        %2610 = vmatprep.mubr.bf16.mxu0 %v2567
        %2611 = vmatmul.mubr.bf16.gmra.mxu0 %v2566
        %v2612 = vpop.f32.mrf.mxu0
        %v2613 = vadd.f32 0.0, %v2612
        %v2614 = vpop.f32.mrf.mxu0
        %v2615 = vpop.f32.mrf.mxu0
        %v2616 = vadd.f32 0.0, %v2615
        %v2617 = vpop.f32.mrf.mxu0
        %2618 = vdwg.mxu0
        %2619 = vmatprep.subr.bf16.mxu0 0
        %2620 = vmatpush1.bf16.msra.mxu0 0
        %2621 = vmatprep.subr.bf16.mxu0 0
        %2622 = vmatpush1.bf16.msra.mxu0 0
        %2623 = vmatprep.subr.bf16.mxu0 0
        %2624 = vmatpush1.bf16.msra.mxu0 0
        %2625 = vmatprep.subr.bf16.mxu0 0
        %2626 = vmatpush1.bf16.msra.mxu0 %v2576
        %2627 = vmatprep.subr.bf16.mxu0 0
        %2628 = vmatpush1.bf16.msra.mxu0 %v2554
        %2629 = vmatprep.subr.bf16.mxu0 0
        %2630 = vmatpush1.bf16.msra.mxu0 %v2553
        %2631 = vmatprep.subr.bf16.mxu0 0
        %2632 = vmatpush1.bf16.msra.mxu0 %v2552
        %2633 = vmatprep.subr.bf16.mxu0 0
        %2634 = vmatpush1.bf16.msra.mxu0 %v2551
        %2635 = vmatprep.subr.bf16.mxu0 0
        %2636 = vmatpush2.bf16.msra.mxu0 0
        %2637 = vmatprep.subr.bf16.mxu0 0
        %2638 = vmatpush2.bf16.msra.mxu0 0
        %2639 = vmatprep.subr.bf16.mxu0 0
        %2640 = vmatpush2.bf16.msra.mxu0 0
        %2641 = vmatprep.subr.bf16.mxu0 0
        %2642 = vmatpush2.bf16.msra.mxu0 0
        %2643 = vmatprep.subr.bf16.mxu0 0
        %2644 = vmatpush2.bf16.msra.mxu0 0
        %2645 = vmatprep.subr.bf16.mxu0 0
        %2646 = vmatpush2.bf16.msra.mxu0 0
        %2647 = vmatprep.subr.bf16.mxu0 0
        %2648 = vmatpush2.bf16.msra.mxu0 0
        %2649 = vmatprep.subr.bf16.mxu0 0
        %2650 = vmatpush2.bf16.msra.mxu0 0
        %2651 = vmatprep.mubr.bf16.mxu0 0
        %2652 = vmatmul.mubr.bf16.gmra.mxu0 %v2573
        %v2653 = vpop.f32.mrf.mxu0
        %v2654 = vadd.f32 %v2613, %v2653
        %v2655 = vpop.f32.mrf.mxu0
        %v2656 = vpop.f32.mrf.mxu0
        %v2657 = vadd.f32 %v2616, %v2656
        %v2658 = vpop.f32.mrf.mxu0
        %2659 = vdwg.mxu0
        %v2660 = vpack.c.bf16 %v2657, %v2654
        %v2661 = vld [vmem:[%s4] sm:$0xf]
        %v2662 = vld [vmem:[%s4 + $0x4] sm:$0xf]
        %v2663 = vld [vmem:[%s4 + $0x8] sm:$0xf]
        %v2664 = vld [vmem:[%s4 + $0xc] sm:$0xf]
        %v2665 = vld [vmem:[%s4 + $0x10] sm:$0xf]
        %v2666 = vld [vmem:[%s4 + $0x14] sm:$0xf]
        %v2667 = vld [vmem:[%s4 + $0x18] sm:$0xf]
        %v2668 = vld [vmem:[%s4 + $0x1c] sm:$0xf]
        %v2669 = vld [vmem:[%s4 + $0x20] sm:$0xf]
        %v2670 = vld [vmem:[%s4 + $0x24] sm:$0xf]
        %v2671 = vld [vmem:[%s4 + $0x28] sm:$0xf]
        %v2672 = vld [vmem:[%s4 + $0x2c] sm:$0xf]
        %v2673 = vld [vmem:[%s4 + $0x30] sm:$0xf]
        %v2674 = vld [vmem:[%s4 + $0x34] sm:$0xf]
        %v2675 = vld [vmem:[%s4 + $0x38] sm:$0xf]
        %v2676 = vld [vmem:[%s4 + $0x3c] sm:$0xf]
        %v2677 = vld [vmem:[%s5] sm:$0x1]
        %v2679 = vlaneseq
        %v2680 = vshrl.u32 %v2679, 7
        %v2681 = vsub.s32 0, %v2680
        %v2682 = vrot.slane %v2677, %v2681
        %v2700 = vunpack.c.l.b16 %v2661
        %v2701 = vunpack.c.l.b16 %v2662
        %v2702 = vunpack.c.l.b16 %v2663
        %v2703 = vunpack.c.l.b16 %v2664
        %v2704 = vunpack.c.l.b16 %v2665
        %v2705 = vunpack.c.l.b16 %v2666
        %v2706 = vunpack.c.l.b16 %v2667
        %v2707 = vunpack.c.l.b16 %v2668
        %v2708 = vunpack.c.l.b16 %v2669
        %v2709 = vunpack.c.l.b16 %v2670
        %v2710 = vunpack.c.l.b16 %v2671
        %v2711 = vunpack.c.l.b16 %v2672
        %v2712 = vunpack.c.l.b16 %v2673
        %v2713 = vunpack.c.l.b16 %v2674
        %v2714 = vunpack.c.l.b16 %v2675
        %v2715 = vunpack.c.l.b16 %v2676
        %v2716 = vpack.c.b16 %v2701, %v2700
        %v2717 = vpack.c.b16 %v2703, %v2702
        %v2718 = vpack.c.b16 %v2705, %v2704
        %v2719 = vpack.c.b16 %v2707, %v2706
        %v2720 = vpack.c.b16 %v2709, %v2708
        %v2721 = vpack.c.b16 %v2711, %v2710
        %v2722 = vpack.c.b16 %v2713, %v2712
        %v2723 = vpack.c.b16 %v2715, %v2714
        %2732 = vmatprep.subr.bf16.mxu0 0
        %2733 = vmatpush1.bf16.msra.mxu0 %v2723
        %2734 = vmatprep.subr.bf16.mxu0 0
        %2735 = vmatpush1.bf16.msra.mxu0 %v2722
        %2736 = vmatprep.subr.bf16.mxu0 0
        %2737 = vmatpush1.bf16.msra.mxu0 %v2721
        %2738 = vmatprep.subr.bf16.mxu0 0
        %2739 = vmatpush1.bf16.msra.mxu0 %v2720
        %2740 = vmatprep.subr.bf16.mxu0 0
        %2741 = vmatpush1.bf16.msra.mxu0 %v2719
        %2742 = vmatprep.subr.bf16.mxu0 0
        %2743 = vmatpush1.bf16.msra.mxu0 %v2718
        %2744 = vmatprep.subr.bf16.mxu0 0
        %2745 = vmatpush1.bf16.msra.mxu0 %v2717
        %2746 = vmatprep.subr.bf16.mxu0 0
        %2747 = vmatpush1.bf16.msra.mxu0 %v2716
        %2748 = vmatprep.subr.bf16.mxu0 0
        %2749 = vmatpush2.bf16.msra.mxu0 0
        %2750 = vmatprep.subr.bf16.mxu0 0
        %2751 = vmatpush2.bf16.msra.mxu0 0
        %2752 = vmatprep.subr.bf16.mxu0 0
        %2753 = vmatpush2.bf16.msra.mxu0 0
        %2754 = vmatprep.subr.bf16.mxu0 0
        %2755 = vmatpush2.bf16.msra.mxu0 0
        %2756 = vmatprep.subr.bf16.mxu0 0
        %2757 = vmatpush2.bf16.msra.mxu0 0
        %2758 = vmatprep.subr.bf16.mxu0 0
        %2759 = vmatpush2.bf16.msra.mxu0 0
        %2760 = vmatprep.subr.bf16.mxu0 0
        %2761 = vmatpush2.bf16.msra.mxu0 0
        %2762 = vmatprep.subr.bf16.mxu0 0
        %2763 = vmatpush2.bf16.msra.mxu0 0
        %2764 = vmatprep.mubr.bf16.mxu0 0
        %2765 = vmatmul.mubr.bf16.gmra.mxu0 %v2660
        %v2766 = vpop.f32.mrf.mxu0
        %v2767 = vadd.f32 %v2682, %v2766
        %v2768 = vpop.f32.mrf.mxu0
        %v2769 = vpop.f32.mrf.mxu0
        %v2770 = vadd.f32 %v2682, %v2769
        %v2771 = vpop.f32.mrf.mxu0
        %2772 = vdwg.mxu0
        %2773 = vst [vmem:[%s244] sm:$0xff] %v2767
        %2774 = vst [vmem:[%s244 + $0x8] sm:$0xff] %v2770
        %s2775 = sand.u32 %s159, 1
        %s2776 = scalar_lea.sflag [#allocation3], %s2775
        %s2777 = sand.u32 %s159, 1
        %s2778 = smul.addr %s2777, 16
        %s2779 = scalar_lea.vmem [#allocation2], %s2778
        // Predicated region
        $region45: #{tpu_custom_call.1} parent=43 // pred_check
          %p2780 = pneg %p169
        $region46: #{tpu_custom_call.1} parent=43 // pred_check_branch
          %2782 = sbr.rel (%p2780) target = $region48
        $region47: #{tpu_custom_call.1} parent=43 // pred_region
          %s2784 = ssub.s32 256, 256
          %2785 = vsyncadd %s2776, %s2784
          %s2786 = smul.addr %s20, 2
          %s2787 = smul.addr %s2786, 128
          %s2788 = scalar_lea.hbm %s6, %s2787
          %s2789 = sshll.u32 %s2779, 4
          %s2790 = int_to_ptr.vmem [resolvable:$true] %s2789
          %2795 = dma.vmem_to_hbm [thread:$0]  %s2790, 256, %s2788, %s2776, 128, 128, 8
        $region48: #{tpu_custom_call.1} parent=43 // pred_fallthru
          _
      $region44: #{tpu_custom_call.1} parent=5 // pred_fallthru
        _
      %p2796 = scmp.le.s32.totalorder 2, %s15
      // Predicated region
      $region49: #{tpu_custom_call.1} parent=5 // pred_check
        %p2797 = pneg %p2796
      $region50: #{tpu_custom_call.1} parent=5 // pred_check_branch
        %2799 = sbr.rel (%p2797) target = $region52
      $region51: #{tpu_custom_call.1} parent=5 // pred_region
        %s2800 = ssub.s32 %s15, 2
        // Predicated region
        $region53: #{tpu_custom_call.1} parent=51 // pred_check
          %p2801 = pneg %p175
        $region54: #{tpu_custom_call.1} parent=51 // pred_check_branch
          %2803 = sbr.rel (%p2801) target = $region56
        $region55: #{tpu_custom_call.1} parent=51 // pred_region
          %s2804 = sand.u32 %s160, 1
          %s2805 = scalar_lea.sflag [#allocation3], %s2804
          %s2806 = sand.u32 %s160, 1
          %s2807 = smul.addr %s2806, 16
          %s2808 = scalar_lea.vmem [#allocation2], %s2807
          %2809 = dma.done %s2805, 256
        $region56: #{tpu_custom_call.1} parent=51 // pred_fallthru
          _
      $region52: #{tpu_custom_call.1} parent=5 // pred_fallthru
        _
    $region6: #{tpu_custom_call.1} parent=1 // loop_footer
      %s19 = sadd.s32 1, %s15
    $region7: #{tpu_custom_call.1} parent=1 // loop_footer_branch
      %14 = sbr.rel target = $region3
    $region8: #{tpu_custom_call.1} parent=1 // loop_exit
      _
    %2810 = vsyncpa [#allocation3], 1
    %s2811 = scalar_lea.sflag [#allocation3], 1
    %2812 = vsyncpa %s2811, 1

</llo_original>
